<compile_context>
chip_gen: v7x
topology: tpu7x:2x2x1
jax: 0.10.0
libtpu: 0.0.40
codegen_flags: <defaults>
</compile_context>

<pallas_src>
import jax
import jax.numpy as jnp
from jax import lax
from jax.experimental import pallas as pl

# ---- model dims --------------------------------------------------------------
BAG = 8          # x.shape[0] : number of instances in the bag
C_IN = 4
H = W = 16
C_OUT = 8        # conv output channels
FEAT = 32        # per-instance feature dim
ATT = 16         # attention hidden dim
N_CLASSES = 2

HW = H * W               # 256
K_IM2COL = 9 * C_IN      # 36
S_TOTAL = BAG * HW       # 2048

P_ROWS = 96              # packed-parameter slab rows (multiple of 8)
P_LANES = 128            # packed-parameter slab lanes


# ---- single fused kernel: conv(im2col) + ReLU + GAP + fc + attention-MIL -----
def _fused_kernel(patches_ref, avg_ref, params_ref, out_ref):
    # carve the packed parameter slab (static slices, all at lane offset 0)
    wconv = params_ref[0:8, 0:K_IM2COL]        # (C_OUT, 9*C_IN)
    bconv = params_ref[8:16, 0:1]              # (C_OUT, 1)
    wfc = params_ref[16:24, 0:FEAT]            # (C_OUT, FEAT)
    wa1 = params_ref[24:56, 0:ATT]             # (FEAT, ATT)
    wcls = params_ref[56:88, 0:N_CLASSES]      # (FEAT, N_CLASSES)
    bfc = params_ref[88:89, 0:FEAT]            # (1, FEAT)
    ba1 = params_ref[89:90, 0:ATT]             # (1, ATT)
    wa2 = params_ref[90:91, 0:ATT]             # (1, ATT)
    ba2 = params_ref[91:92, 0:1]               # (1, 1)
    bcls = params_ref[92:93, 0:N_CLASSES]      # (1, N_CLASSES)

    # conv3x3 (SAME) over the whole bag as one lane-dense MXU matmul:
    # (C_OUT, 9*C_IN) @ (9*C_IN, BAG*H*W) -> (C_OUT, BAG*H*W)
    y = jnp.dot(wconv, patches_ref[...], preferred_element_type=jnp.float32)
    y = jnp.maximum(y + bconv, 0.0)                         # bias bcast + ReLU

    # per-instance global average pool: one MXU matmul contracting the
    # 2048-wide lane axis of both operands (avg matrix is a constant input).
    pooled = lax.dot_general(avg_ref[...], y, (((1,), (1,)), ((), ())),
                             preferred_element_type=jnp.float32)   # (BAG, C_OUT)

    # per-instance fc -> features (BAG, FEAT)
    feats = jnp.dot(pooled, wfc, preferred_element_type=jnp.float32) + bfc

    # attention-MIL pooling + classifier
    h = jnp.tanh(jnp.dot(feats, wa1,
                         preferred_element_type=jnp.float32) + ba1)   # (BAG, ATT)
    # scores = h @ wa2 + ba2, done on the VPU (mul + lane reduce); wa2 is (1, ATT)
    scores = jnp.sum(h * wa2, axis=1, keepdims=True) + ba2            # (BAG, 1)
    scores = scores - jnp.max(scores, axis=0, keepdims=True)
    e = jnp.exp(scores)
    attn = e / jnp.sum(e, axis=0, keepdims=True)          # exact softmax over bag
    bag = jnp.sum(attn * feats, axis=0, keepdims=True)                # (1, FEAT)
    out_ref[...] = jnp.dot(bag, wcls,
                           preferred_element_type=jnp.float32) + bcls


# ---- one-time parameter packing (done once, outside the hot path) ------------
def pack_params(feat_params, mil_params):
    wconv, bconv, wfc, bfc = feat_params
    wa1, ba1, wa2, ba2, wcls, bcls = mil_params
    p = jnp.zeros((P_ROWS, P_LANES), dtype=jnp.float32)
    p = p.at[0:8, 0:K_IM2COL].set(wconv.reshape(K_IM2COL, C_OUT).T)
    p = p.at[8:16, 0:1].set(bconv.reshape(C_OUT, 1))
    p = p.at[16:24, 0:FEAT].set(wfc)
    p = p.at[24:56, 0:ATT].set(wa1)
    p = p.at[56:88, 0:N_CLASSES].set(wcls)
    p = p.at[88, 0:FEAT].set(bfc.reshape(FEAT))
    p = p.at[89, 0:ATT].set(ba1.reshape(ATT))
    p = p.at[90, 0:ATT].set(wa2.reshape(ATT))
    p = p.at[91, 0].set(ba2.reshape(()))
    p = p.at[92, 0:N_CLASSES].set(bcls.reshape(N_CLASSES))
    return p


# ---- wrapper -----------------------------------------------------------------
@jax.jit
def inference_forward(x_nchw, params_packed):
    # im2col: transpose x FIRST so the stacked taps land directly in
    # (tap, cin, bag, h, w) order -> contiguous reshape, no 5-D transpose copy.
    x_t = jnp.transpose(x_nchw, (1, 0, 2, 3))               # (C_IN, BAG, H, W)
    xpad = jnp.pad(x_t, ((0, 0), (0, 0), (1, 1), (1, 1)))
    taps = [xpad[:, :, ky:ky + H, kx:kx + W]
            for ky in range(3) for kx in range(3)]          # each (C_IN, BAG, H, W)
    patches = jnp.stack(taps, axis=0).reshape(K_IM2COL, S_TOTAL)   # (36, 2048)

    # compile-time-constant block-averaging matrix, lane-dense (BAG, BAG*H*W)
    inst = jnp.arange(S_TOTAL, dtype=jnp.int32) // HW
    avg = (inst[None, :] == jnp.arange(BAG, dtype=jnp.int32)[:, None]
           ).astype(jnp.float32) * (1.0 / HW)               # (8, 2048)

    # single pallas_call, single grid point, everything resident in VMEM
    return pl.pallas_call(
        _fused_kernel,
        out_shape=jax.ShapeDtypeStruct((1, N_CLASSES), jnp.float32),
    )(patches, avg, params_packed)


# ---- pure-JAX reference for a sanity check -----------------------------------
def reference_forward(x_nchw, feat_params, mil_params):
    wconv, bconv, wfc, bfc = feat_params
    wa1, ba1, wa2, ba2, wcls, bcls = mil_params
    w_oihw = jnp.transpose(wconv, (3, 2, 0, 1))
    y = lax.conv_general_dilated(x_nchw, w_oihw, (1, 1), 'SAME',
                                 dimension_numbers=('NCHW', 'OIHW', 'NCHW'),
                                 precision=lax.Precision.HIGHEST)
    y = jnp.maximum(y + bconv.reshape(1, C_OUT, 1, 1), 0.0)
    pooled = y.mean(axis=(2, 3))                   # (BAG, C_OUT)
    feats = pooled @ wfc + bfc                     # (BAG, FEAT)
    h = jnp.tanh(feats @ wa1 + ba1)
    s = h @ wa2 + ba2
    a = jax.nn.softmax(s, axis=0)
    bag = jnp.sum(a * feats, axis=0, keepdims=True)
    return bag @ wcls + bcls


# ---- main --------------------------------------------------------------------
if __name__ == "__main__":
    key = jax.random.PRNGKey(0)
    keys = jax.random.split(key, 8)

    x = jax.random.normal(keys[0], (BAG, C_IN, H, W), dtype=jnp.float32)

    # feature_model params
    wconv = 0.1 * jax.random.normal(keys[1], (3, 3, C_IN, C_OUT), dtype=jnp.float32)
    bconv = 0.05 * jax.random.normal(keys[2], (1, C_OUT), dtype=jnp.float32)
    wfc = 0.1 * jax.random.normal(keys[3], (C_OUT, FEAT), dtype=jnp.float32)
    bfc = 0.05 * jax.random.normal(keys[4], (1, FEAT), dtype=jnp.float32)
    feat_params = (wconv, bconv, wfc, bfc)

    # mil_model params
    wa1 = 0.1 * jax.random.normal(keys[5], (FEAT, ATT), dtype=jnp.float32)
    ba1 = jnp.zeros((1, ATT), dtype=jnp.float32)
    wa2 = 0.1 * jax.random.normal(keys[6], (ATT, 1), dtype=jnp.float32)
    ba2 = jnp.zeros((1, 1), dtype=jnp.float32)
    wcls = 0.1 * jax.random.normal(keys[7], (FEAT, N_CLASSES), dtype=jnp.float32)
    bcls = jnp.zeros((1, N_CLASSES), dtype=jnp.float32)
    mil_params = (wa1, ba1, wa2, ba2, wcls, bcls)

    params_packed = pack_params(feat_params, mil_params)

    logits = inference_forward(x, params_packed)
    logits = jax.block_until_ready(logits)

    ref = reference_forward(x, feat_params, mil_params)
    assert logits.shape == (1, N_CLASSES)
    assert jnp.allclose(logits, ref, rtol=2e-2, atol=2e-2), (logits, ref)

    print("KERNEL_OK")
</pallas_src>

<mosaic_0001>
module attributes {stable_mosaic.version = 11 : i64} {
  func.func @_fused_kernel(%arg0: memref<36x2048xf32, #tpu.memory_space<vmem>>, %arg1: memref<8x2048xf32, #tpu.memory_space<vmem>>, %arg2: memref<96x128xf32, #tpu.memory_space<vmem>>, %arg3: memref<1x2xf32, #tpu.memory_space<vmem>>) attributes {dimension_semantics = [], scalar_prefetch = 0 : i64, scratch_operands = 0 : i64, tpu.core_type = #tpu.core_type<tc>} {
    %c0 = arith.constant 0 : index
    %c0_0 = arith.constant 0 : index
    %0 = vector.load %arg2[%c0, %c0_0] : memref<96x128xf32, #tpu.memory_space<vmem>>, vector<8x36xf32>
    %c8 = arith.constant 8 : index
    %c0_1 = arith.constant 0 : index
    %1 = vector.load %arg2[%c8, %c0_1] : memref<96x128xf32, #tpu.memory_space<vmem>>, vector<8x1xf32>
    %c16 = arith.constant 16 : index
    %c0_2 = arith.constant 0 : index
    %2 = vector.load %arg2[%c16, %c0_2] : memref<96x128xf32, #tpu.memory_space<vmem>>, vector<8x32xf32>
    %c24 = arith.constant 24 : index
    %c0_3 = arith.constant 0 : index
    %3 = vector.load %arg2[%c24, %c0_3] : memref<96x128xf32, #tpu.memory_space<vmem>>, vector<32x16xf32>
    %c56 = arith.constant 56 : index
    %c0_4 = arith.constant 0 : index
    %4 = vector.load %arg2[%c56, %c0_4] : memref<96x128xf32, #tpu.memory_space<vmem>>, vector<32x2xf32>
    %c88 = arith.constant 88 : index
    %c0_5 = arith.constant 0 : index
    %5 = vector.load %arg2[%c88, %c0_5] : memref<96x128xf32, #tpu.memory_space<vmem>>, vector<1x32xf32>
    %c89 = arith.constant 89 : index
    %c0_6 = arith.constant 0 : index
    %6 = vector.load %arg2[%c89, %c0_6] : memref<96x128xf32, #tpu.memory_space<vmem>>, vector<1x16xf32>
    %c90 = arith.constant 90 : index
    %c0_7 = arith.constant 0 : index
    %7 = vector.load %arg2[%c90, %c0_7] : memref<96x128xf32, #tpu.memory_space<vmem>>, vector<1x16xf32>
    %c91 = arith.constant 91 : index
    %c0_8 = arith.constant 0 : index
    %8 = vector.load %arg2[%c91, %c0_8] : memref<96x128xf32, #tpu.memory_space<vmem>>, vector<1x1xf32>
    %c92 = arith.constant 92 : index
    %c0_9 = arith.constant 0 : index
    %9 = vector.load %arg2[%c92, %c0_9] : memref<96x128xf32, #tpu.memory_space<vmem>>, vector<1x2xf32>
    %c0_10 = arith.constant 0 : index
    %c0_11 = arith.constant 0 : index
    %10 = vector.load %arg0[%c0_10, %c0_11] : memref<36x2048xf32, #tpu.memory_space<vmem>>, vector<36x2048xf32>
    %cst = arith.constant dense<0.000000e+00> : vector<8x2048xf32>
    %11 = tpu.matmul %0, %10, %cst {dimension_numbers = #tpu.dot_dimension_numbers<[1], [0], [0], [1], [0, 0, 1, 1], [], []>} : vector<8x36xf32>, vector<36x2048xf32>, vector<8x2048xf32> -> vector<8x2048xf32>
    %12 = vector.broadcast %1 : vector<8x1xf32> to vector<8x2048xf32>
    %13 = arith.addf %11, %12 : vector<8x2048xf32>
    %cst_12 = arith.constant 0.000000e+00 : f32
    %14 = vector.broadcast %cst_12 : f32 to vector<8x2048xf32>
    %15 = arith.maximumf %13, %14 : vector<8x2048xf32>
    %c0_13 = arith.constant 0 : index
    %c0_14 = arith.constant 0 : index
    %16 = vector.load %arg1[%c0_13, %c0_14] : memref<8x2048xf32, #tpu.memory_space<vmem>>, vector<8x2048xf32>
    %cst_15 = arith.constant dense<0.000000e+00> : vector<8x8xf32>
    %17 = tpu.matmul %16, %15, %cst_15 {dimension_numbers = #tpu.dot_dimension_numbers<[1], [1], [0], [0], [0, 0, 1, 0], [], []>} : vector<8x2048xf32>, vector<8x2048xf32>, vector<8x8xf32> -> vector<8x8xf32>
    %cst_16 = arith.constant dense<0.000000e+00> : vector<8x32xf32>
    %18 = tpu.matmul %17, %2, %cst_16 {dimension_numbers = #tpu.dot_dimension_numbers<[1], [0], [0], [1], [0, 0, 1, 1], [], []>} : vector<8x8xf32>, vector<8x32xf32>, vector<8x32xf32> -> vector<8x32xf32>
    %19 = vector.broadcast %5 : vector<1x32xf32> to vector<8x32xf32>
    %20 = arith.addf %18, %19 : vector<8x32xf32>
    %cst_17 = arith.constant dense<0.000000e+00> : vector<8x16xf32>
    %21 = tpu.matmul %20, %3, %cst_17 {dimension_numbers = #tpu.dot_dimension_numbers<[1], [0], [0], [1], [0, 0, 1, 1], [], []>} : vector<8x32xf32>, vector<32x16xf32>, vector<8x16xf32> -> vector<8x16xf32>
    %22 = vector.broadcast %6 : vector<1x16xf32> to vector<8x16xf32>
    %23 = arith.addf %21, %22 : vector<8x16xf32>
    %24 = math.tanh %23 : vector<8x16xf32>
    %25 = vector.broadcast %7 : vector<1x16xf32> to vector<8x16xf32>
    %26 = arith.mulf %24, %25 : vector<8x16xf32>
    %cst_18 = arith.constant dense<0.000000e+00> : vector<8xf32>
    %27 = vector.multi_reduction <add>, %26, %cst_18 [1] : vector<8x16xf32> to vector<8xf32>
    %28 = vector.shape_cast %27 : vector<8xf32> to vector<8x1xf32>
    %29 = vector.broadcast %8 : vector<1x1xf32> to vector<8x1xf32>
    %30 = arith.addf %28, %29 : vector<8x1xf32>
    %cst_19 = arith.constant dense<0xFF800000> : vector<1xf32>
    %31 = vector.multi_reduction <maximumf>, %30, %cst_19 [0] : vector<8x1xf32> to vector<1xf32>
    %32 = vector.shape_cast %31 : vector<1xf32> to vector<1x1xf32>
    %33 = vector.broadcast %32 : vector<1x1xf32> to vector<8x1xf32>
    %34 = arith.subf %30, %33 : vector<8x1xf32>
    %35 = math.exp %34 : vector<8x1xf32>
    %cst_20 = arith.constant dense<0.000000e+00> : vector<1xf32>
    %36 = vector.multi_reduction <add>, %35, %cst_20 [0] : vector<8x1xf32> to vector<1xf32>
    %37 = vector.shape_cast %36 : vector<1xf32> to vector<1x1xf32>
    %38 = vector.broadcast %37 : vector<1x1xf32> to vector<8x1xf32>
    %39 = arith.divf %35, %38 : vector<8x1xf32>
    %40 = vector.broadcast %39 : vector<8x1xf32> to vector<8x32xf32>
    %41 = arith.mulf %40, %20 : vector<8x32xf32>
    %cst_21 = arith.constant dense<0.000000e+00> : vector<32xf32>
    %42 = vector.multi_reduction <add>, %41, %cst_21 [0] : vector<8x32xf32> to vector<32xf32>
    %43 = vector.shape_cast %42 : vector<32xf32> to vector<1x32xf32>
    %cst_22 = arith.constant dense<0.000000e+00> : vector<1x2xf32>
    %44 = tpu.matmul %43, %4, %cst_22 {dimension_numbers = #tpu.dot_dimension_numbers<[1], [0], [0], [1], [0, 0, 1, 1], [], []>} : vector<1x32xf32>, vector<32x2xf32>, vector<1x2xf32> -> vector<1x2xf32>
    %45 = arith.addf %44, %9 : vector<1x2xf32>
    %c0_23 = arith.constant 0 : index
    %c0_24 = arith.constant 0 : index
    %46 = vector.load %arg3[%c0_23, %c0_24] : memref<1x2xf32, #tpu.memory_space<vmem>>, vector<1x2xf32>
    tpu.vector_store %arg3[%c0_23, %c0_24], %45 {strides = array<i32>} : memref<1x2xf32, #tpu.memory_space<vmem>>, vector<1x2xf32>,
    return
  }
}

</mosaic_0001>

<llo_original>
// kernel: inference_forward.1
$region0: #{inference_forward.1}
  #allocation0 [shape = 'u32[]', space=smem, size = 0x4, offset = 0x4, fixed_abs, tag = 'smem constant byte address 0x4 - core index']
  #allocation1 [shape = 'u32[144,128]{1,0:T(1,128)}', space=vmem, size = 0x12000, scoped, tag = 'internal scratch']
  %s0 = inlined_call_operand.vmem [shape: f32[36,2048], index: 0, kind: input, shape index: {}]
  %s1 = inlined_call_operand.vmem [shape: f32[8,2048], index: 1, kind: input, shape index: {}]
  %s2 = inlined_call_operand.vmem [shape: f32[96,128], index: 2, kind: input, shape index: {}]
  %s3 = inlined_call_operand.hbm [shape: f32[1,2], index: 3, kind: output, shape index: {}]
  %s4 = sld [smem:[#allocation0]]
  $region22: #{inference_forward.1} parent=0
    _
  %s6 = ssub.s32 1, %s4
  %s7 = scalar_select 0, %s6, %s4
  $region1: #{inference_forward.1} parent=0
    #allocation2 [shape = 'u8[512]{0}', space=vmem, size = 0x400, scoped, tag = 'output window, operand 0, single buffered']
    #allocation3 [shape = 's32[1]{0}', space=sflag, size = 0x4, scoped, tag = 'scoped memory for inference_forward.1']
    %8 = vsyncpa [#allocation3], 0
    // Predicated region
    $region2: #{inference_forward.1} parent=1 // pred_check
      _
    $region3: #{inference_forward.1} parent=1 // pred_check_branch
      %10 = sbr.rel (0) target = $region5
    $region4: #{inference_forward.1} parent=1 // pred_region
      _
    $region5: #{inference_forward.1} parent=1 // pred_fallthru
      _
    // Predicated region
    $region6: #{inference_forward.1} parent=1 // pred_check
      _
    $region7: #{inference_forward.1} parent=1 // pred_check_branch
      %12 = sbr.rel (0) target = $region9
    $region8: #{inference_forward.1} parent=1 // pred_region
      _
    $region9: #{inference_forward.1} parent=1 // pred_fallthru
      _
    // Predicated region
    $region10: #{inference_forward.1} parent=1 // pred_check
      _
    $region11: #{inference_forward.1} parent=1 // pred_check_branch
      %14 = sbr.rel (0) target = $region13
    $region12: #{inference_forward.1} parent=1 // pred_region
      _
    $region13: #{inference_forward.1} parent=1 // pred_fallthru
      _
    %v15 = vld [vmem:[%s2] sm:$0xff]
    %v16 = vld [vmem:[%s2 + $0x8] sm:$0xff]
    %v17 = vld [vmem:[%s2 + $0x10] sm:$0xff]
    %v18 = vld [vmem:[%s2 + $0x18] sm:$0xff]
    %v19 = vld [vmem:[%s2 + $0x20] sm:$0xff]
    %v20 = vld [vmem:[%s2 + $0x28] sm:$0xff]
    %v21 = vld [vmem:[%s2 + $0x30] sm:$0xff]
    %v22 = vld [vmem:[%s2 + $0x38] sm:$0xff]
    %v23 = vld [vmem:[%s2 + $0x40] sm:$0xff]
    %v24 = vld [vmem:[%s2 + $0x48] sm:$0xff]
    %v25 = vld [vmem:[%s2 + $0x50] sm:$0xff]
    %v26 = vld [vmem:[%s2 + $0x58] sm:$0x1]
    %v27 = vld [vmem:[%s2 + $0x59] sm:$0x1]
    %v28 = vld [vmem:[%s2 + $0x5a] sm:$0x1]
    %v29 = vld [vmem:[%s2 + $0x5b] sm:$0x1]
    %v30 = vld [vmem:[%s2 + $0x5c] sm:$0x1]
    %v31 = vld [vmem:[%s0] sm:$0xff]
    %v32 = vld [vmem:[%s0 + $0x8] sm:$0xff]
    %v33 = vld [vmem:[%s0 + $0x10] sm:$0xff]
    %v34 = vld [vmem:[%s0 + $0x18] sm:$0xff]
    %v35 = vld [vmem:[%s0 + $0x20] sm:$0xff]
    %v36 = vld [vmem:[%s0 + $0x28] sm:$0xff]
    %v37 = vld [vmem:[%s0 + $0x30] sm:$0xff]
    %v38 = vld [vmem:[%s0 + $0x38] sm:$0xff]
    %v39 = vld [vmem:[%s0 + $0x40] sm:$0xff]
    %v40 = vld [vmem:[%s0 + $0x48] sm:$0xff]
    %v41 = vld [vmem:[%s0 + $0x50] sm:$0xff]
    %v42 = vld [vmem:[%s0 + $0x58] sm:$0xff]
    %v43 = vld [vmem:[%s0 + $0x60] sm:$0xff]
    %v44 = vld [vmem:[%s0 + $0x68] sm:$0xff]
    %v45 = vld [vmem:[%s0 + $0x70] sm:$0xff]
    %v46 = vld [vmem:[%s0 + $0x78] sm:$0xff]
    %v47 = vld [vmem:[%s0 + $0x80] sm:$0xff]
    %v48 = vld [vmem:[%s0 + $0x88] sm:$0xff]
    %v49 = vld [vmem:[%s0 + $0x90] sm:$0xff]
    %v50 = vld [vmem:[%s0 + $0x98] sm:$0xff]
    %v51 = vld [vmem:[%s0 + $0xa0] sm:$0xff]
    %v52 = vld [vmem:[%s0 + $0xa8] sm:$0xff]
    %v53 = vld [vmem:[%s0 + $0xb0] sm:$0xff]
    %v54 = vld [vmem:[%s0 + $0xb8] sm:$0xff]
    %v55 = vld [vmem:[%s0 + $0xc0] sm:$0xff]
    %v56 = vld [vmem:[%s0 + $0xc8] sm:$0xff]
    %v57 = vld [vmem:[%s0 + $0xd0] sm:$0xff]
    %v58 = vld [vmem:[%s0 + $0xd8] sm:$0xff]
    %v59 = vld [vmem:[%s0 + $0xe0] sm:$0xff]
    %v60 = vld [vmem:[%s0 + $0xe8] sm:$0xff]
    %v61 = vld [vmem:[%s0 + $0xf0] sm:$0xff]
    %v62 = vld [vmem:[%s0 + $0xf8] sm:$0xff]
    %v63 = vld [vmem:[%s0 + $0x100] sm:$0xff]
    %v64 = vld [vmem:[%s0 + $0x108] sm:$0xff]
    %v65 = vld [vmem:[%s0 + $0x110] sm:$0xff]
    %v66 = vld [vmem:[%s0 + $0x118] sm:$0xff]
    %v67 = vld [vmem:[%s0 + $0x120] sm:$0xff]
    %v68 = vld [vmem:[%s0 + $0x128] sm:$0xff]
    %v69 = vld [vmem:[%s0 + $0x130] sm:$0xff]
    %v70 = vld [vmem:[%s0 + $0x138] sm:$0xff]
    %v71 = vld [vmem:[%s0 + $0x140] sm:$0xff]
    %v72 = vld [vmem:[%s0 + $0x148] sm:$0xff]
    %v73 = vld [vmem:[%s0 + $0x150] sm:$0xff]
    %v74 = vld [vmem:[%s0 + $0x158] sm:$0xff]
    %v75 = vld [vmem:[%s0 + $0x160] sm:$0xff]
    %v76 = vld [vmem:[%s0 + $0x168] sm:$0xff]
    %v77 = vld [vmem:[%s0 + $0x170] sm:$0xff]
    %v78 = vld [vmem:[%s0 + $0x178] sm:$0xff]
    %v79 = vld [vmem:[%s0 + $0x180] sm:$0xff]
    %v80 = vld [vmem:[%s0 + $0x188] sm:$0xff]
    %v81 = vld [vmem:[%s0 + $0x190] sm:$0xff]
    %v82 = vld [vmem:[%s0 + $0x198] sm:$0xff]
    %v83 = vld [vmem:[%s0 + $0x1a0] sm:$0xff]
    %v84 = vld [vmem:[%s0 + $0x1a8] sm:$0xff]
    %v85 = vld [vmem:[%s0 + $0x1b0] sm:$0xff]
    %v86 = vld [vmem:[%s0 + $0x1b8] sm:$0xff]
    %v87 = vld [vmem:[%s0 + $0x1c0] sm:$0xff]
    %v88 = vld [vmem:[%s0 + $0x1c8] sm:$0xff]
    %v89 = vld [vmem:[%s0 + $0x1d0] sm:$0xff]
    %v90 = vld [vmem:[%s0 + $0x1d8] sm:$0xff]
    %v91 = vld [vmem:[%s0 + $0x1e0] sm:$0xff]
    %v92 = vld [vmem:[%s0 + $0x1e8] sm:$0xff]
    %v93 = vld [vmem:[%s0 + $0x1f0] sm:$0xff]
    %v94 = vld [vmem:[%s0 + $0x1f8] sm:$0xff]
    %v95 = vld [vmem:[%s0 + $0x200] sm:$0xf]
    %v96 = vld [vmem:[%s0 + $0x208] sm:$0xf]
    %v97 = vld [vmem:[%s0 + $0x210] sm:$0xf]
    %v98 = vld [vmem:[%s0 + $0x218] sm:$0xf]
    %v99 = vld [vmem:[%s0 + $0x220] sm:$0xf]
    %v100 = vld [vmem:[%s0 + $0x228] sm:$0xf]
    %v101 = vld [vmem:[%s0 + $0x230] sm:$0xf]
    %v102 = vld [vmem:[%s0 + $0x238] sm:$0xf]
    %v103 = vld [vmem:[%s0 + $0x240] sm:$0xf]
    %v104 = vld [vmem:[%s0 + $0x248] sm:$0xf]
    %v105 = vld [vmem:[%s0 + $0x250] sm:$0xf]
    %v106 = vld [vmem:[%s0 + $0x258] sm:$0xf]
    %v107 = vld [vmem:[%s0 + $0x260] sm:$0xf]
    %v108 = vld [vmem:[%s0 + $0x268] sm:$0xf]
    %v109 = vld [vmem:[%s0 + $0x270] sm:$0xf]
    %v110 = vld [vmem:[%s0 + $0x278] sm:$0xf]
    %112 = vset.pattern.permute.xlu0 0
    %113 = vperm.xlu0 %112, %v16
    %v114 = vpop.permute.xlu0 %113
    %vm116 = vcmask 293888
    %v118 = vsel %vm116, %v15, 0
    %vm120 = vcmask 1043456
    %v122 = vsel %vm120, %v95, 0
    %v125 = vsel %vm120, %v96, 0
    %v128 = vsel %vm120, %v97, 0
    %v131 = vsel %vm120, %v98, 0
    %v134 = vsel %vm120, %v99, 0
    %v137 = vsel %vm120, %v100, 0
    %v140 = vsel %vm120, %v101, 0
    %v143 = vsel %vm120, %v102, 0
    %v146 = vsel %vm120, %v103, 0
    %v149 = vsel %vm120, %v104, 0
    %v152 = vsel %vm120, %v105, 0
    %v155 = vsel %vm120, %v106, 0
    %v158 = vsel %vm120, %v107, 0
    %v161 = vsel %vm120, %v108, 0
    %v164 = vsel %vm120, %v109, 0
    %v167 = vsel %vm120, %v110, 0
    %169 = vmatprep.subr.mxu0 %v32
    %170 = vmatpush1.msra.mxu0 %v31
    %171 = vmatprep.subr.mxu0 %v48
    %172 = vmatpush1.msra.mxu0 %v47
    %173 = vmatprep.subr.mxu0 %v64
    %174 = vmatpush1.msra.mxu0 %v63
    %175 = vmatprep.subr.mxu0 %v80
    %176 = vmatpush1.msra.mxu0 %v79
    %177 = vmatprep.subr.mxu0 %v125
    %178 = vmatpush1.msra.mxu0 %v122
    %179 = vmatprep.subr.mxu0 0.0
    %180 = vmatpush1.msra.mxu0 0.0
    %181 = vmatprep.subr.mxu0 0.0
    %182 = vmatpush1.msra.mxu0 0.0
    %183 = vmatprep.subr.mxu0 0.0
    %184 = vmatpush1.msra.mxu0 0.0
    %185 = vmatprep.subr.mxu0 0.0
    %186 = vmatpush1.msra.mxu0 0.0
    %187 = vmatprep.subr.mxu0 0.0
    %188 = vmatpush1.msra.mxu0 0.0
    %189 = vmatprep.subr.mxu0 0.0
    %190 = vmatpush1.msra.mxu0 0.0
    %191 = vmatprep.subr.mxu0 0.0
    %192 = vmatpush1.msra.mxu0 0.0
    %193 = vmatprep.subr.mxu0 0.0
    %194 = vmatpush1.msra.mxu0 0.0
    %195 = vmatprep.subr.mxu0 0.0
    %196 = vmatpush1.msra.mxu0 0.0
    %197 = vmatprep.subr.mxu0 0.0
    %198 = vmatpush1.msra.mxu0 0.0
    %199 = vmatprep.subr.mxu0 0.0
    %200 = vmatpush1.msra.mxu0 0.0
    %201 = vmatprep.subr.mxu0 0.0
    %202 = vmatpush1.msra.mxu0 0.0
    %203 = vmatprep.subr.mxu0 0.0
    %204 = vmatpush1.msra.mxu0 0.0
    %205 = vmatprep.subr.mxu0 0.0
    %206 = vmatpush1.msra.mxu0 0.0
    %207 = vmatprep.subr.mxu0 0.0
    %208 = vmatpush1.msra.mxu0 0.0
    %209 = vmatprep.subr.mxu0 0.0
    %210 = vmatpush1.msra.mxu0 0.0
    %211 = vmatprep.subr.mxu0 0.0
    %212 = vmatpush1.msra.mxu0 0.0
    %213 = vmatprep.subr.mxu0 0.0
    %214 = vmatpush1.msra.mxu0 0.0
    %215 = vmatprep.subr.mxu0 0.0
    %216 = vmatpush1.msra.mxu0 0.0
    %217 = vmatprep.subr.mxu0 0.0
    %218 = vmatpush1.msra.mxu0 0.0
    %219 = vmatprep.subr.mxu0 0.0
    %220 = vmatpush1.msra.mxu0 0.0
    %221 = vmatprep.subr.mxu0 0.0
    %222 = vmatpush1.msra.mxu0 0.0
    %223 = vmatprep.subr.mxu0 0.0
    %224 = vmatpush1.msra.mxu0 0.0
    %225 = vmatprep.subr.mxu0 0.0
    %226 = vmatpush1.msra.mxu0 0.0
    %227 = vmatprep.subr.mxu0 0.0
    %228 = vmatpush1.msra.mxu0 0.0
    %229 = vmatprep.subr.mxu0 0.0
    %230 = vmatpush1.msra.mxu0 0.0
    %231 = vmatprep.subr.mxu0 0.0
    %232 = vmatpush1.msra.mxu0 0.0
    %233 = vmatprep.mubr.f32.mxu0 0.0
    %234 = vmatmul.mubr.f32.gmra.mrb[0].mxu0 %v118
    %v235 = vpop.f32.mrb[0].mxu0
    %v236 = vadd.f32 %v114, %v235
    %v237 = vpop.f32.mrb[0].mxu0
    %v238 = vadd.f32 %v114, %v237
    %239 = vdwg.mxu0
    %240 = vmatprep.subr.mxu0 %v34
    %241 = vmatpush1.msra.mxu0 %v33
    %242 = vmatprep.subr.mxu0 %v50
    %243 = vmatpush1.msra.mxu0 %v49
    %244 = vmatprep.subr.mxu0 %v66
    %245 = vmatpush1.msra.mxu0 %v65
    %246 = vmatprep.subr.mxu0 %v82
    %247 = vmatpush1.msra.mxu0 %v81
    %248 = vmatprep.subr.mxu0 %v131
    %249 = vmatpush1.msra.mxu0 %v128
    %250 = vmatprep.subr.mxu0 0.0
    %251 = vmatpush1.msra.mxu0 0.0
    %252 = vmatprep.subr.mxu0 0.0
    %253 = vmatpush1.msra.mxu0 0.0
    %254 = vmatprep.subr.mxu0 0.0
    %255 = vmatpush1.msra.mxu0 0.0
    %256 = vmatprep.subr.mxu0 0.0
    %257 = vmatpush1.msra.mxu0 0.0
    %258 = vmatprep.subr.mxu0 0.0
    %259 = vmatpush1.msra.mxu0 0.0
    %260 = vmatprep.subr.mxu0 0.0
    %261 = vmatpush1.msra.mxu0 0.0
    %262 = vmatprep.subr.mxu0 0.0
    %263 = vmatpush1.msra.mxu0 0.0
    %264 = vmatprep.subr.mxu0 0.0
    %265 = vmatpush1.msra.mxu0 0.0
    %266 = vmatprep.subr.mxu0 0.0
    %267 = vmatpush1.msra.mxu0 0.0
    %268 = vmatprep.subr.mxu0 0.0
    %269 = vmatpush1.msra.mxu0 0.0
    %270 = vmatprep.subr.mxu0 0.0
    %271 = vmatpush1.msra.mxu0 0.0
    %272 = vmatprep.subr.mxu0 0.0
    %273 = vmatpush1.msra.mxu0 0.0
    %274 = vmatprep.subr.mxu0 0.0
    %275 = vmatpush1.msra.mxu0 0.0
    %276 = vmatprep.subr.mxu0 0.0
    %277 = vmatpush1.msra.mxu0 0.0
    %278 = vmatprep.subr.mxu0 0.0
    %279 = vmatpush1.msra.mxu0 0.0
    %280 = vmatprep.subr.mxu0 0.0
    %281 = vmatpush1.msra.mxu0 0.0
    %282 = vmatprep.subr.mxu0 0.0
    %283 = vmatpush1.msra.mxu0 0.0
    %284 = vmatprep.subr.mxu0 0.0
    %285 = vmatpush1.msra.mxu0 0.0
    %286 = vmatprep.subr.mxu0 0.0
    %287 = vmatpush1.msra.mxu0 0.0
    %288 = vmatprep.subr.mxu0 0.0
    %289 = vmatpush1.msra.mxu0 0.0
    %290 = vmatprep.subr.mxu0 0.0
    %291 = vmatpush1.msra.mxu0 0.0
    %292 = vmatprep.subr.mxu0 0.0
    %293 = vmatpush1.msra.mxu0 0.0
    %294 = vmatprep.subr.mxu0 0.0
    %295 = vmatpush1.msra.mxu0 0.0
    %296 = vmatprep.subr.mxu0 0.0
    %297 = vmatpush1.msra.mxu0 0.0
    %298 = vmatprep.subr.mxu0 0.0
    %299 = vmatpush1.msra.mxu0 0.0
    %300 = vmatprep.subr.mxu0 0.0
    %301 = vmatpush1.msra.mxu0 0.0
    %302 = vmatprep.subr.mxu0 0.0
    %303 = vmatpush1.msra.mxu0 0.0
    %304 = vmatprep.mubr.f32.mxu0 0.0
    %305 = vmatmul.mubr.f32.gmra.mrb[0].mxu0 %v118
    %v306 = vpop.f32.mrb[0].mxu0
    %v307 = vadd.f32 %v114, %v306
    %v308 = vpop.f32.mrb[0].mxu0
    %v309 = vadd.f32 %v114, %v308
    %310 = vdwg.mxu0
    %311 = vmatprep.subr.mxu0 %v36
    %312 = vmatpush1.msra.mxu0 %v35
    %313 = vmatprep.subr.mxu0 %v52
    %314 = vmatpush1.msra.mxu0 %v51
    %315 = vmatprep.subr.mxu0 %v68
    %316 = vmatpush1.msra.mxu0 %v67
    %317 = vmatprep.subr.mxu0 %v84
    %318 = vmatpush1.msra.mxu0 %v83
    %319 = vmatprep.subr.mxu0 %v137
    %320 = vmatpush1.msra.mxu0 %v134
    %321 = vmatprep.subr.mxu0 0.0
    %322 = vmatpush1.msra.mxu0 0.0
    %323 = vmatprep.subr.mxu0 0.0
    %324 = vmatpush1.msra.mxu0 0.0
    %325 = vmatprep.subr.mxu0 0.0
    %326 = vmatpush1.msra.mxu0 0.0
    %327 = vmatprep.subr.mxu0 0.0
    %328 = vmatpush1.msra.mxu0 0.0
    %329 = vmatprep.subr.mxu0 0.0
    %330 = vmatpush1.msra.mxu0 0.0
    %331 = vmatprep.subr.mxu0 0.0
    %332 = vmatpush1.msra.mxu0 0.0
    %333 = vmatprep.subr.mxu0 0.0
    %334 = vmatpush1.msra.mxu0 0.0
    %335 = vmatprep.subr.mxu0 0.0
    %336 = vmatpush1.msra.mxu0 0.0
    %337 = vmatprep.subr.mxu0 0.0
    %338 = vmatpush1.msra.mxu0 0.0
    %339 = vmatprep.subr.mxu0 0.0
    %340 = vmatpush1.msra.mxu0 0.0
    %341 = vmatprep.subr.mxu0 0.0
    %342 = vmatpush1.msra.mxu0 0.0
    %343 = vmatprep.subr.mxu0 0.0
    %344 = vmatpush1.msra.mxu0 0.0
    %345 = vmatprep.subr.mxu0 0.0
    %346 = vmatpush1.msra.mxu0 0.0
    %347 = vmatprep.subr.mxu0 0.0
    %348 = vmatpush1.msra.mxu0 0.0
    %349 = vmatprep.subr.mxu0 0.0
    %350 = vmatpush1.msra.mxu0 0.0
    %351 = vmatprep.subr.mxu0 0.0
    %352 = vmatpush1.msra.mxu0 0.0
    %353 = vmatprep.subr.mxu0 0.0
    %354 = vmatpush1.msra.mxu0 0.0
    %355 = vmatprep.subr.mxu0 0.0
    %356 = vmatpush1.msra.mxu0 0.0
    %357 = vmatprep.subr.mxu0 0.0
    %358 = vmatpush1.msra.mxu0 0.0
    %359 = vmatprep.subr.mxu0 0.0
    %360 = vmatpush1.msra.mxu0 0.0
    %361 = vmatprep.subr.mxu0 0.0
    %362 = vmatpush1.msra.mxu0 0.0
    %363 = vmatprep.subr.mxu0 0.0
    %364 = vmatpush1.msra.mxu0 0.0
    %365 = vmatprep.subr.mxu0 0.0
    %366 = vmatpush1.msra.mxu0 0.0
    %367 = vmatprep.subr.mxu0 0.0
    %368 = vmatpush1.msra.mxu0 0.0
    %369 = vmatprep.subr.mxu0 0.0
    %370 = vmatpush1.msra.mxu0 0.0
    %371 = vmatprep.subr.mxu0 0.0
    %372 = vmatpush1.msra.mxu0 0.0
    %373 = vmatprep.subr.mxu0 0.0
    %374 = vmatpush1.msra.mxu0 0.0
    %375 = vmatprep.mubr.f32.mxu0 0.0
    %376 = vmatmul.mubr.f32.gmra.mrb[0].mxu0 %v118
    %v377 = vpop.f32.mrb[0].mxu0
    %v378 = vadd.f32 %v114, %v377
    %v379 = vpop.f32.mrb[0].mxu0
    %v380 = vadd.f32 %v114, %v379
    %381 = vdwg.mxu0
    %382 = vmatprep.subr.mxu0 %v38
    %383 = vmatpush1.msra.mxu0 %v37
    %384 = vmatprep.subr.mxu0 %v54
    %385 = vmatpush1.msra.mxu0 %v53
    %386 = vmatprep.subr.mxu0 %v70
    %387 = vmatpush1.msra.mxu0 %v69
    %388 = vmatprep.subr.mxu0 %v86
    %389 = vmatpush1.msra.mxu0 %v85
    %390 = vmatprep.subr.mxu0 %v143
    %391 = vmatpush1.msra.mxu0 %v140
    %392 = vmatprep.subr.mxu0 0.0
    %393 = vmatpush1.msra.mxu0 0.0
    %394 = vmatprep.subr.mxu0 0.0
    %395 = vmatpush1.msra.mxu0 0.0
    %396 = vmatprep.subr.mxu0 0.0
    %397 = vmatpush1.msra.mxu0 0.0
    %398 = vmatprep.subr.mxu0 0.0
    %399 = vmatpush1.msra.mxu0 0.0
    %400 = vmatprep.subr.mxu0 0.0
    %401 = vmatpush1.msra.mxu0 0.0
    %402 = vmatprep.subr.mxu0 0.0
    %403 = vmatpush1.msra.mxu0 0.0
    %404 = vmatprep.subr.mxu0 0.0
    %405 = vmatpush1.msra.mxu0 0.0
    %406 = vmatprep.subr.mxu0 0.0
    %407 = vmatpush1.msra.mxu0 0.0
    %408 = vmatprep.subr.mxu0 0.0
    %409 = vmatpush1.msra.mxu0 0.0
    %410 = vmatprep.subr.mxu0 0.0
    %411 = vmatpush1.msra.mxu0 0.0
    %412 = vmatprep.subr.mxu0 0.0
    %413 = vmatpush1.msra.mxu0 0.0
    %414 = vmatprep.subr.mxu0 0.0
    %415 = vmatpush1.msra.mxu0 0.0
    %416 = vmatprep.subr.mxu0 0.0
    %417 = vmatpush1.msra.mxu0 0.0
    %418 = vmatprep.subr.mxu0 0.0
    %419 = vmatpush1.msra.mxu0 0.0
    %420 = vmatprep.subr.mxu0 0.0
    %421 = vmatpush1.msra.mxu0 0.0
    %422 = vmatprep.subr.mxu0 0.0
    %423 = vmatpush1.msra.mxu0 0.0
    %424 = vmatprep.subr.mxu0 0.0
    %425 = vmatpush1.msra.mxu0 0.0
    %426 = vmatprep.subr.mxu0 0.0
    %427 = vmatpush1.msra.mxu0 0.0
    %428 = vmatprep.subr.mxu0 0.0
    %429 = vmatpush1.msra.mxu0 0.0
    %430 = vmatprep.subr.mxu0 0.0
    %431 = vmatpush1.msra.mxu0 0.0
    %432 = vmatprep.subr.mxu0 0.0
    %433 = vmatpush1.msra.mxu0 0.0
    %434 = vmatprep.subr.mxu0 0.0
    %435 = vmatpush1.msra.mxu0 0.0
    %436 = vmatprep.subr.mxu0 0.0
    %437 = vmatpush1.msra.mxu0 0.0
    %438 = vmatprep.subr.mxu0 0.0
    %439 = vmatpush1.msra.mxu0 0.0
    %440 = vmatprep.subr.mxu0 0.0
    %441 = vmatpush1.msra.mxu0 0.0
    %442 = vmatprep.subr.mxu0 0.0
    %443 = vmatpush1.msra.mxu0 0.0
    %444 = vmatprep.subr.mxu0 0.0
    %445 = vmatpush1.msra.mxu0 0.0
    %446 = vmatprep.mubr.f32.mxu0 0.0
    %447 = vmatmul.mubr.f32.gmra.mrb[0].mxu0 %v118
    %v448 = vpop.f32.mrb[0].mxu0
    %v449 = vadd.f32 %v114, %v448
    %v450 = vpop.f32.mrb[0].mxu0
    %v451 = vadd.f32 %v114, %v450
    %452 = vdwg.mxu0
    %453 = vmatprep.subr.mxu0 %v40
    %454 = vmatpush1.msra.mxu0 %v39
    %455 = vmatprep.subr.mxu0 %v56
    %456 = vmatpush1.msra.mxu0 %v55
    %457 = vmatprep.subr.mxu0 %v72
    %458 = vmatpush1.msra.mxu0 %v71
    %459 = vmatprep.subr.mxu0 %v88
    %460 = vmatpush1.msra.mxu0 %v87
    %461 = vmatprep.subr.mxu0 %v149
    %462 = vmatpush1.msra.mxu0 %v146
    %463 = vmatprep.subr.mxu0 0.0
    %464 = vmatpush1.msra.mxu0 0.0
    %465 = vmatprep.subr.mxu0 0.0
    %466 = vmatpush1.msra.mxu0 0.0
    %467 = vmatprep.subr.mxu0 0.0
    %468 = vmatpush1.msra.mxu0 0.0
    %469 = vmatprep.subr.mxu0 0.0
    %470 = vmatpush1.msra.mxu0 0.0
    %471 = vmatprep.subr.mxu0 0.0
    %472 = vmatpush1.msra.mxu0 0.0
    %473 = vmatprep.subr.mxu0 0.0
    %474 = vmatpush1.msra.mxu0 0.0
    %475 = vmatprep.subr.mxu0 0.0
    %476 = vmatpush1.msra.mxu0 0.0
    %477 = vmatprep.subr.mxu0 0.0
    %478 = vmatpush1.msra.mxu0 0.0
    %479 = vmatprep.subr.mxu0 0.0
    %480 = vmatpush1.msra.mxu0 0.0
    %481 = vmatprep.subr.mxu0 0.0
    %482 = vmatpush1.msra.mxu0 0.0
    %483 = vmatprep.subr.mxu0 0.0
    %484 = vmatpush1.msra.mxu0 0.0
    %485 = vmatprep.subr.mxu0 0.0
    %486 = vmatpush1.msra.mxu0 0.0
    %487 = vmatprep.subr.mxu0 0.0
    %488 = vmatpush1.msra.mxu0 0.0
    %489 = vmatprep.subr.mxu0 0.0
    %490 = vmatpush1.msra.mxu0 0.0
    %491 = vmatprep.subr.mxu0 0.0
    %492 = vmatpush1.msra.mxu0 0.0
    %493 = vmatprep.subr.mxu0 0.0
    %494 = vmatpush1.msra.mxu0 0.0
    %495 = vmatprep.subr.mxu0 0.0
    %496 = vmatpush1.msra.mxu0 0.0
    %497 = vmatprep.subr.mxu0 0.0
    %498 = vmatpush1.msra.mxu0 0.0
    %499 = vmatprep.subr.mxu0 0.0
    %500 = vmatpush1.msra.mxu0 0.0
    %501 = vmatprep.subr.mxu0 0.0
    %502 = vmatpush1.msra.mxu0 0.0
    %503 = vmatprep.subr.mxu0 0.0
    %504 = vmatpush1.msra.mxu0 0.0
    %505 = vmatprep.subr.mxu0 0.0
    %506 = vmatpush1.msra.mxu0 0.0
    %507 = vmatprep.subr.mxu0 0.0
    %508 = vmatpush1.msra.mxu0 0.0
    %509 = vmatprep.subr.mxu0 0.0
    %510 = vmatpush1.msra.mxu0 0.0
    %511 = vmatprep.subr.mxu0 0.0
    %512 = vmatpush1.msra.mxu0 0.0
    %513 = vmatprep.subr.mxu0 0.0
    %514 = vmatpush1.msra.mxu0 0.0
    %515 = vmatprep.subr.mxu0 0.0
    %516 = vmatpush1.msra.mxu0 0.0
    %517 = vmatprep.mubr.f32.mxu0 0.0
    %518 = vmatmul.mubr.f32.gmra.mrb[0].mxu0 %v118
    %v519 = vpop.f32.mrb[0].mxu0
    %v520 = vadd.f32 %v114, %v519
    %v521 = vpop.f32.mrb[0].mxu0
    %v522 = vadd.f32 %v114, %v521
    %523 = vdwg.mxu0
    %524 = vmatprep.subr.mxu0 %v42
    %525 = vmatpush1.msra.mxu0 %v41
    %526 = vmatprep.subr.mxu0 %v58
    %527 = vmatpush1.msra.mxu0 %v57
    %528 = vmatprep.subr.mxu0 %v74
    %529 = vmatpush1.msra.mxu0 %v73
    %530 = vmatprep.subr.mxu0 %v90
    %531 = vmatpush1.msra.mxu0 %v89
    %532 = vmatprep.subr.mxu0 %v155
    %533 = vmatpush1.msra.mxu0 %v152
    %534 = vmatprep.subr.mxu0 0.0
    %535 = vmatpush1.msra.mxu0 0.0
    %536 = vmatprep.subr.mxu0 0.0
    %537 = vmatpush1.msra.mxu0 0.0
    %538 = vmatprep.subr.mxu0 0.0
    %539 = vmatpush1.msra.mxu0 0.0
    %540 = vmatprep.subr.mxu0 0.0
    %541 = vmatpush1.msra.mxu0 0.0
    %542 = vmatprep.subr.mxu0 0.0
    %543 = vmatpush1.msra.mxu0 0.0
    %544 = vmatprep.subr.mxu0 0.0
    %545 = vmatpush1.msra.mxu0 0.0
    %546 = vmatprep.subr.mxu0 0.0
    %547 = vmatpush1.msra.mxu0 0.0
    %548 = vmatprep.subr.mxu0 0.0
    %549 = vmatpush1.msra.mxu0 0.0
    %550 = vmatprep.subr.mxu0 0.0
    %551 = vmatpush1.msra.mxu0 0.0
    %552 = vmatprep.subr.mxu0 0.0
    %553 = vmatpush1.msra.mxu0 0.0
    %554 = vmatprep.subr.mxu0 0.0
    %555 = vmatpush1.msra.mxu0 0.0
    %556 = vmatprep.subr.mxu0 0.0
    %557 = vmatpush1.msra.mxu0 0.0
    %558 = vmatprep.subr.mxu0 0.0
    %559 = vmatpush1.msra.mxu0 0.0
    %560 = vmatprep.subr.mxu0 0.0
    %561 = vmatpush1.msra.mxu0 0.0
    %562 = vmatprep.subr.mxu0 0.0
    %563 = vmatpush1.msra.mxu0 0.0
    %564 = vmatprep.subr.mxu0 0.0
    %565 = vmatpush1.msra.mxu0 0.0
    %566 = vmatprep.subr.mxu0 0.0
    %567 = vmatpush1.msra.mxu0 0.0
    %568 = vmatprep.subr.mxu0 0.0
    %569 = vmatpush1.msra.mxu0 0.0
    %570 = vmatprep.subr.mxu0 0.0
    %571 = vmatpush1.msra.mxu0 0.0
    %572 = vmatprep.subr.mxu0 0.0
    %573 = vmatpush1.msra.mxu0 0.0
    %574 = vmatprep.subr.mxu0 0.0
    %575 = vmatpush1.msra.mxu0 0.0
    %576 = vmatprep.subr.mxu0 0.0
    %577 = vmatpush1.msra.mxu0 0.0
    %578 = vmatprep.subr.mxu0 0.0
    %579 = vmatpush1.msra.mxu0 0.0
    %580 = vmatprep.subr.mxu0 0.0
    %581 = vmatpush1.msra.mxu0 0.0
    %582 = vmatprep.subr.mxu0 0.0
    %583 = vmatpush1.msra.mxu0 0.0
    %584 = vmatprep.subr.mxu0 0.0
    %585 = vmatpush1.msra.mxu0 0.0
    %586 = vmatprep.subr.mxu0 0.0
    %587 = vmatpush1.msra.mxu0 0.0
    %588 = vmatprep.mubr.f32.mxu0 0.0
    %589 = vmatmul.mubr.f32.gmra.mrb[0].mxu0 %v118
    %v590 = vpop.f32.mrb[0].mxu0
    %v591 = vadd.f32 %v114, %v590
    %v592 = vpop.f32.mrb[0].mxu0
    %v593 = vadd.f32 %v114, %v592
    %594 = vdwg.mxu0
    %595 = vmatprep.subr.mxu0 %v44
    %596 = vmatpush1.msra.mxu0 %v43
    %597 = vmatprep.subr.mxu0 %v60
    %598 = vmatpush1.msra.mxu0 %v59
    %599 = vmatprep.subr.mxu0 %v76
    %600 = vmatpush1.msra.mxu0 %v75
    %601 = vmatprep.subr.mxu0 %v92
    %602 = vmatpush1.msra.mxu0 %v91
    %603 = vmatprep.subr.mxu0 %v161
    %604 = vmatpush1.msra.mxu0 %v158
    %605 = vmatprep.subr.mxu0 0.0
    %606 = vmatpush1.msra.mxu0 0.0
    %607 = vmatprep.subr.mxu0 0.0
    %608 = vmatpush1.msra.mxu0 0.0
    %609 = vmatprep.subr.mxu0 0.0
    %610 = vmatpush1.msra.mxu0 0.0
    %611 = vmatprep.subr.mxu0 0.0
    %612 = vmatpush1.msra.mxu0 0.0
    %613 = vmatprep.subr.mxu0 0.0
    %614 = vmatpush1.msra.mxu0 0.0
    %615 = vmatprep.subr.mxu0 0.0
    %616 = vmatpush1.msra.mxu0 0.0
    %617 = vmatprep.subr.mxu0 0.0
    %618 = vmatpush1.msra.mxu0 0.0
    %619 = vmatprep.subr.mxu0 0.0
    %620 = vmatpush1.msra.mxu0 0.0
    %621 = vmatprep.subr.mxu0 0.0
    %622 = vmatpush1.msra.mxu0 0.0
    %623 = vmatprep.subr.mxu0 0.0
    %624 = vmatpush1.msra.mxu0 0.0
    %625 = vmatprep.subr.mxu0 0.0
    %626 = vmatpush1.msra.mxu0 0.0
    %627 = vmatprep.subr.mxu0 0.0
    %628 = vmatpush1.msra.mxu0 0.0
    %629 = vmatprep.subr.mxu0 0.0
    %630 = vmatpush1.msra.mxu0 0.0
    %631 = vmatprep.subr.mxu0 0.0
    %632 = vmatpush1.msra.mxu0 0.0
    %633 = vmatprep.subr.mxu0 0.0
    %634 = vmatpush1.msra.mxu0 0.0
    %635 = vmatprep.subr.mxu0 0.0
    %636 = vmatpush1.msra.mxu0 0.0
    %637 = vmatprep.subr.mxu0 0.0
    %638 = vmatpush1.msra.mxu0 0.0
    %639 = vmatprep.subr.mxu0 0.0
    %640 = vmatpush1.msra.mxu0 0.0
    %641 = vmatprep.subr.mxu0 0.0
    %642 = vmatpush1.msra.mxu0 0.0
    %643 = vmatprep.subr.mxu0 0.0
    %644 = vmatpush1.msra.mxu0 0.0
    %645 = vmatprep.subr.mxu0 0.0
    %646 = vmatpush1.msra.mxu0 0.0
    %647 = vmatprep.subr.mxu0 0.0
    %648 = vmatpush1.msra.mxu0 0.0
    %649 = vmatprep.subr.mxu0 0.0
    %650 = vmatpush1.msra.mxu0 0.0
    %651 = vmatprep.subr.mxu0 0.0
    %652 = vmatpush1.msra.mxu0 0.0
    %653 = vmatprep.subr.mxu0 0.0
    %654 = vmatpush1.msra.mxu0 0.0
    %655 = vmatprep.subr.mxu0 0.0
    %656 = vmatpush1.msra.mxu0 0.0
    %657 = vmatprep.subr.mxu0 0.0
    %658 = vmatpush1.msra.mxu0 0.0
    %659 = vmatprep.mubr.f32.mxu0 0.0
    %660 = vmatmul.mubr.f32.gmra.mrb[0].mxu0 %v118
    %v661 = vpop.f32.mrb[0].mxu0
    %v662 = vadd.f32 %v114, %v661
    %v663 = vpop.f32.mrb[0].mxu0
    %v664 = vadd.f32 %v114, %v663
    %665 = vdwg.mxu0
    %666 = vmatprep.subr.mxu0 %v46
    %667 = vmatpush1.msra.mxu0 %v45
    %668 = vmatprep.subr.mxu0 %v62
    %669 = vmatpush1.msra.mxu0 %v61
    %670 = vmatprep.subr.mxu0 %v78
    %671 = vmatpush1.msra.mxu0 %v77
    %672 = vmatprep.subr.mxu0 %v94
    %673 = vmatpush1.msra.mxu0 %v93
    %674 = vmatprep.subr.mxu0 %v167
    %675 = vmatpush1.msra.mxu0 %v164
    %676 = vmatprep.subr.mxu0 0.0
    %677 = vmatpush1.msra.mxu0 0.0
    %678 = vmatprep.subr.mxu0 0.0
    %679 = vmatpush1.msra.mxu0 0.0
    %680 = vmatprep.subr.mxu0 0.0
    %681 = vmatpush1.msra.mxu0 0.0
    %682 = vmatprep.subr.mxu0 0.0
    %683 = vmatpush1.msra.mxu0 0.0
    %684 = vmatprep.subr.mxu0 0.0
    %685 = vmatpush1.msra.mxu0 0.0
    %686 = vmatprep.subr.mxu0 0.0
    %687 = vmatpush1.msra.mxu0 0.0
    %688 = vmatprep.subr.mxu0 0.0
    %689 = vmatpush1.msra.mxu0 0.0
    %690 = vmatprep.subr.mxu0 0.0
    %691 = vmatpush1.msra.mxu0 0.0
    %692 = vmatprep.subr.mxu0 0.0
    %693 = vmatpush1.msra.mxu0 0.0
    %694 = vmatprep.subr.mxu0 0.0
    %695 = vmatpush1.msra.mxu0 0.0
    %696 = vmatprep.subr.mxu0 0.0
    %697 = vmatpush1.msra.mxu0 0.0
    %698 = vmatprep.subr.mxu0 0.0
    %699 = vmatpush1.msra.mxu0 0.0
    %700 = vmatprep.subr.mxu0 0.0
    %701 = vmatpush1.msra.mxu0 0.0
    %702 = vmatprep.subr.mxu0 0.0
    %703 = vmatpush1.msra.mxu0 0.0
    %704 = vmatprep.subr.mxu0 0.0
    %705 = vmatpush1.msra.mxu0 0.0
    %706 = vmatprep.subr.mxu0 0.0
    %707 = vmatpush1.msra.mxu0 0.0
    %708 = vmatprep.subr.mxu0 0.0
    %709 = vmatpush1.msra.mxu0 0.0
    %710 = vmatprep.subr.mxu0 0.0
    %711 = vmatpush1.msra.mxu0 0.0
    %712 = vmatprep.subr.mxu0 0.0
    %713 = vmatpush1.msra.mxu0 0.0
    %714 = vmatprep.subr.mxu0 0.0
    %715 = vmatpush1.msra.mxu0 0.0
    %716 = vmatprep.subr.mxu0 0.0
    %717 = vmatpush1.msra.mxu0 0.0
    %718 = vmatprep.subr.mxu0 0.0
    %719 = vmatpush1.msra.mxu0 0.0
    %720 = vmatprep.subr.mxu0 0.0
    %721 = vmatpush1.msra.mxu0 0.0
    %722 = vmatprep.subr.mxu0 0.0
    %723 = vmatpush1.msra.mxu0 0.0
    %724 = vmatprep.subr.mxu0 0.0
    %725 = vmatpush1.msra.mxu0 0.0
    %726 = vmatprep.subr.mxu0 0.0
    %727 = vmatpush1.msra.mxu0 0.0
    %728 = vmatprep.subr.mxu0 0.0
    %729 = vmatpush1.msra.mxu0 0.0
    %730 = vmatprep.mubr.f32.mxu0 0.0
    %731 = vmatmul.mubr.f32.gmra.mrb[0].mxu0 %v118
    %v732 = vpop.f32.mrb[0].mxu0
    %v733 = vadd.f32 %v114, %v732
    %v734 = vpop.f32.mrb[0].mxu0
    %v735 = vadd.f32 %v114, %v734
    %736 = vdwg.mxu0
    %v737 = vmax.f32 %v236, 0.0
    %v738 = vmax.f32 %v238, 0.0
    %v739 = vmax.f32 %v307, 0.0
    %v740 = vmax.f32 %v309, 0.0
    %v741 = vmax.f32 %v378, 0.0
    %v742 = vmax.f32 %v380, 0.0
    %v743 = vmax.f32 %v449, 0.0
    %v744 = vmax.f32 %v451, 0.0
    %v745 = vmax.f32 %v520, 0.0
    %v746 = vmax.f32 %v522, 0.0
    %v747 = vmax.f32 %v591, 0.0
    %v748 = vmax.f32 %v593, 0.0
    %v749 = vmax.f32 %v662, 0.0
    %v750 = vmax.f32 %v664, 0.0
    %v751 = vmax.f32 %v733, 0.0
    %v752 = vmax.f32 %v735, 0.0
    %v753 = vld [vmem:[%s1] sm:$0xff]
    %v754 = vld [vmem:[%s1 + $0x8] sm:$0xff]
    %v755 = vld [vmem:[%s1 + $0x10] sm:$0xff]
    %v756 = vld [vmem:[%s1 + $0x18] sm:$0xff]
    %v757 = vld [vmem:[%s1 + $0x20] sm:$0xff]
    %v758 = vld [vmem:[%s1 + $0x28] sm:$0xff]
    %v759 = vld [vmem:[%s1 + $0x30] sm:$0xff]
    %v760 = vld [vmem:[%s1 + $0x38] sm:$0xff]
    %v761 = vld [vmem:[%s1 + $0x40] sm:$0xff]
    %v762 = vld [vmem:[%s1 + $0x48] sm:$0xff]
    %v763 = vld [vmem:[%s1 + $0x50] sm:$0xff]
    %v764 = vld [vmem:[%s1 + $0x58] sm:$0xff]
    %v765 = vld [vmem:[%s1 + $0x60] sm:$0xff]
    %v766 = vld [vmem:[%s1 + $0x68] sm:$0xff]
    %v767 = vld [vmem:[%s1 + $0x70] sm:$0xff]
    %v768 = vld [vmem:[%s1 + $0x78] sm:$0xff]
    %769 = vmatprep.subr.mxu0 %v738
    %770 = vmatpush1.xpose.msra.mxu0 %v737
    %771 = vmatprep.subr.mxu0 0.0
    %772 = vmatpush1.xpose.msra.mxu0 0.0
    %773 = vmatprep.subr.mxu0 0.0
    %774 = vmatpush1.xpose.msra.mxu0 0.0
    %775 = vmatprep.subr.mxu0 0.0
    %776 = vmatpush1.xpose.msra.mxu0 0.0
    %777 = vmatprep.subr.mxu0 0.0
    %778 = vmatpush1.xpose.msra.mxu0 0.0
    %779 = vmatprep.subr.mxu0 0.0
    %780 = vmatpush1.xpose.msra.mxu0 0.0
    %781 = vmatprep.subr.mxu0 0.0
    %782 = vmatpush1.xpose.msra.mxu0 0.0
    %783 = vmatprep.subr.mxu0 0.0
    %784 = vmatpush1.xpose.msra.mxu0 0.0
    %785 = vmatprep.subr.mxu0 0.0
    %786 = vmatpush1.xpose.msra.mxu0 0.0
    %787 = vmatprep.subr.mxu0 0.0
    %788 = vmatpush1.xpose.msra.mxu0 0.0
    %789 = vmatprep.subr.mxu0 0.0
    %790 = vmatpush1.xpose.msra.mxu0 0.0
    %791 = vmatprep.subr.mxu0 0.0
    %792 = vmatpush1.xpose.msra.mxu0 0.0
    %793 = vmatprep.subr.mxu0 0.0
    %794 = vmatpush1.xpose.msra.mxu0 0.0
    %795 = vmatprep.subr.mxu0 0.0
    %796 = vmatpush1.xpose.msra.mxu0 0.0
    %797 = vmatprep.subr.mxu0 0.0
    %798 = vmatpush1.xpose.msra.mxu0 0.0
    %799 = vmatprep.subr.mxu0 0.0
    %800 = vmatpush1.xpose.msra.mxu0 0.0
    %801 = vmatprep.subr.mxu0 0.0
    %802 = vmatpush1.xpose.msra.mxu0 0.0
    %803 = vmatprep.subr.mxu0 0.0
    %804 = vmatpush1.xpose.msra.mxu0 0.0
    %805 = vmatprep.subr.mxu0 0.0
    %806 = vmatpush1.xpose.msra.mxu0 0.0
    %807 = vmatprep.subr.mxu0 0.0
    %808 = vmatpush1.xpose.msra.mxu0 0.0
    %809 = vmatprep.subr.mxu0 0.0
    %810 = vmatpush1.xpose.msra.mxu0 0.0
    %811 = vmatprep.subr.mxu0 0.0
    %812 = vmatpush1.xpose.msra.mxu0 0.0
    %813 = vmatprep.subr.mxu0 0.0
    %814 = vmatpush1.xpose.msra.mxu0 0.0
    %815 = vmatprep.subr.mxu0 0.0
    %816 = vmatpush1.xpose.msra.mxu0 0.0
    %817 = vmatprep.subr.mxu0 0.0
    %818 = vmatpush1.xpose.msra.mxu0 0.0
    %819 = vmatprep.subr.mxu0 0.0
    %820 = vmatpush1.xpose.msra.mxu0 0.0
    %821 = vmatprep.subr.mxu0 0.0
    %822 = vmatpush1.xpose.msra.mxu0 0.0
    %823 = vmatprep.subr.mxu0 0.0
    %824 = vmatpush1.xpose.msra.mxu0 0.0
    %825 = vmatprep.subr.mxu0 0.0
    %826 = vmatpush1.xpose.msra.mxu0 0.0
    %827 = vmatprep.subr.mxu0 0.0
    %828 = vmatpush1.xpose.msra.mxu0 0.0
    %829 = vmatprep.subr.mxu0 0.0
    %830 = vmatpush1.xpose.msra.mxu0 0.0
    %831 = vmatprep.subr.mxu0 0.0
    %832 = vmatpush1.xpose.msra.mxu0 0.0
    %833 = vmatprep.mubr.f32.mxu0 %v754
    %834 = vmatmul.mubr.f32.gmra.mrb[0].mxu0 %v753
    %v835 = vpop.f32.mrb[0].mxu0
    %v836 = vadd.f32 0.0, %v835
    %v837 = vpop.f32.mrb[0].mxu0
    %838 = vdwg.mxu0
    %839 = vmatprep.subr.mxu0 %v740
    %840 = vmatpush1.xpose.msra.mxu0 %v739
    %841 = vmatprep.subr.mxu0 0.0
    %842 = vmatpush1.xpose.msra.mxu0 0.0
    %843 = vmatprep.subr.mxu0 0.0
    %844 = vmatpush1.xpose.msra.mxu0 0.0
    %845 = vmatprep.subr.mxu0 0.0
    %846 = vmatpush1.xpose.msra.mxu0 0.0
    %847 = vmatprep.subr.mxu0 0.0
    %848 = vmatpush1.xpose.msra.mxu0 0.0
    %849 = vmatprep.subr.mxu0 0.0
    %850 = vmatpush1.xpose.msra.mxu0 0.0
    %851 = vmatprep.subr.mxu0 0.0
    %852 = vmatpush1.xpose.msra.mxu0 0.0
    %853 = vmatprep.subr.mxu0 0.0
    %854 = vmatpush1.xpose.msra.mxu0 0.0
    %855 = vmatprep.subr.mxu0 0.0
    %856 = vmatpush1.xpose.msra.mxu0 0.0
    %857 = vmatprep.subr.mxu0 0.0
    %858 = vmatpush1.xpose.msra.mxu0 0.0
    %859 = vmatprep.subr.mxu0 0.0
    %860 = vmatpush1.xpose.msra.mxu0 0.0
    %861 = vmatprep.subr.mxu0 0.0
    %862 = vmatpush1.xpose.msra.mxu0 0.0
    %863 = vmatprep.subr.mxu0 0.0
    %864 = vmatpush1.xpose.msra.mxu0 0.0
    %865 = vmatprep.subr.mxu0 0.0
    %866 = vmatpush1.xpose.msra.mxu0 0.0
    %867 = vmatprep.subr.mxu0 0.0
    %868 = vmatpush1.xpose.msra.mxu0 0.0
    %869 = vmatprep.subr.mxu0 0.0
    %870 = vmatpush1.xpose.msra.mxu0 0.0
    %871 = vmatprep.subr.mxu0 0.0
    %872 = vmatpush1.xpose.msra.mxu0 0.0
    %873 = vmatprep.subr.mxu0 0.0
    %874 = vmatpush1.xpose.msra.mxu0 0.0
    %875 = vmatprep.subr.mxu0 0.0
    %876 = vmatpush1.xpose.msra.mxu0 0.0
    %877 = vmatprep.subr.mxu0 0.0
    %878 = vmatpush1.xpose.msra.mxu0 0.0
    %879 = vmatprep.subr.mxu0 0.0
    %880 = vmatpush1.xpose.msra.mxu0 0.0
    %881 = vmatprep.subr.mxu0 0.0
    %882 = vmatpush1.xpose.msra.mxu0 0.0
    %883 = vmatprep.subr.mxu0 0.0
    %884 = vmatpush1.xpose.msra.mxu0 0.0
    %885 = vmatprep.subr.mxu0 0.0
    %886 = vmatpush1.xpose.msra.mxu0 0.0
    %887 = vmatprep.subr.mxu0 0.0
    %888 = vmatpush1.xpose.msra.mxu0 0.0
    %889 = vmatprep.subr.mxu0 0.0
    %890 = vmatpush1.xpose.msra.mxu0 0.0
    %891 = vmatprep.subr.mxu0 0.0
    %892 = vmatpush1.xpose.msra.mxu0 0.0
    %893 = vmatprep.subr.mxu0 0.0
    %894 = vmatpush1.xpose.msra.mxu0 0.0
    %895 = vmatprep.subr.mxu0 0.0
    %896 = vmatpush1.xpose.msra.mxu0 0.0
    %897 = vmatprep.subr.mxu0 0.0
    %898 = vmatpush1.xpose.msra.mxu0 0.0
    %899 = vmatprep.subr.mxu0 0.0
    %900 = vmatpush1.xpose.msra.mxu0 0.0
    %901 = vmatprep.subr.mxu0 0.0
    %902 = vmatpush1.xpose.msra.mxu0 0.0
    %903 = vmatprep.mubr.f32.mxu0 %v756
    %904 = vmatmul.mubr.f32.gmra.mrb[0].mxu0 %v755
    %v905 = vpop.f32.mrb[0].mxu0
    %v906 = vadd.f32 %v836, %v905
    %v907 = vpop.f32.mrb[0].mxu0
    %908 = vdwg.mxu0
    %909 = vmatprep.subr.mxu0 %v742
    %910 = vmatpush1.xpose.msra.mxu0 %v741
    %911 = vmatprep.subr.mxu0 0.0
    %912 = vmatpush1.xpose.msra.mxu0 0.0
    %913 = vmatprep.subr.mxu0 0.0
    %914 = vmatpush1.xpose.msra.mxu0 0.0
    %915 = vmatprep.subr.mxu0 0.0
    %916 = vmatpush1.xpose.msra.mxu0 0.0
    %917 = vmatprep.subr.mxu0 0.0
    %918 = vmatpush1.xpose.msra.mxu0 0.0
    %919 = vmatprep.subr.mxu0 0.0
    %920 = vmatpush1.xpose.msra.mxu0 0.0
    %921 = vmatprep.subr.mxu0 0.0
    %922 = vmatpush1.xpose.msra.mxu0 0.0
    %923 = vmatprep.subr.mxu0 0.0
    %924 = vmatpush1.xpose.msra.mxu0 0.0
    %925 = vmatprep.subr.mxu0 0.0
    %926 = vmatpush1.xpose.msra.mxu0 0.0
    %927 = vmatprep.subr.mxu0 0.0
    %928 = vmatpush1.xpose.msra.mxu0 0.0
    %929 = vmatprep.subr.mxu0 0.0
    %930 = vmatpush1.xpose.msra.mxu0 0.0
    %931 = vmatprep.subr.mxu0 0.0
    %932 = vmatpush1.xpose.msra.mxu0 0.0
    %933 = vmatprep.subr.mxu0 0.0
    %934 = vmatpush1.xpose.msra.mxu0 0.0
    %935 = vmatprep.subr.mxu0 0.0
    %936 = vmatpush1.xpose.msra.mxu0 0.0
    %937 = vmatprep.subr.mxu0 0.0
    %938 = vmatpush1.xpose.msra.mxu0 0.0
    %939 = vmatprep.subr.mxu0 0.0
    %940 = vmatpush1.xpose.msra.mxu0 0.0
    %941 = vmatprep.subr.mxu0 0.0
    %942 = vmatpush1.xpose.msra.mxu0 0.0
    %943 = vmatprep.subr.mxu0 0.0
    %944 = vmatpush1.xpose.msra.mxu0 0.0
    %945 = vmatprep.subr.mxu0 0.0
    %946 = vmatpush1.xpose.msra.mxu0 0.0
    %947 = vmatprep.subr.mxu0 0.0
    %948 = vmatpush1.xpose.msra.mxu0 0.0
    %949 = vmatprep.subr.mxu0 0.0
    %950 = vmatpush1.xpose.msra.mxu0 0.0
    %951 = vmatprep.subr.mxu0 0.0
    %952 = vmatpush1.xpose.msra.mxu0 0.0
    %953 = vmatprep.subr.mxu0 0.0
    %954 = vmatpush1.xpose.msra.mxu0 0.0
    %955 = vmatprep.subr.mxu0 0.0
    %956 = vmatpush1.xpose.msra.mxu0 0.0
    %957 = vmatprep.subr.mxu0 0.0
    %958 = vmatpush1.xpose.msra.mxu0 0.0
    %959 = vmatprep.subr.mxu0 0.0
    %960 = vmatpush1.xpose.msra.mxu0 0.0
    %961 = vmatprep.subr.mxu0 0.0
    %962 = vmatpush1.xpose.msra.mxu0 0.0
    %963 = vmatprep.subr.mxu0 0.0
    %964 = vmatpush1.xpose.msra.mxu0 0.0
    %965 = vmatprep.subr.mxu0 0.0
    %966 = vmatpush1.xpose.msra.mxu0 0.0
    %967 = vmatprep.subr.mxu0 0.0
    %968 = vmatpush1.xpose.msra.mxu0 0.0
    %969 = vmatprep.subr.mxu0 0.0
    %970 = vmatpush1.xpose.msra.mxu0 0.0
    %971 = vmatprep.subr.mxu0 0.0
    %972 = vmatpush1.xpose.msra.mxu0 0.0
    %973 = vmatprep.mubr.f32.mxu0 %v758
    %974 = vmatmul.mubr.f32.gmra.mrb[0].mxu0 %v757
    %v975 = vpop.f32.mrb[0].mxu0
    %v976 = vadd.f32 %v906, %v975
    %v977 = vpop.f32.mrb[0].mxu0
    %978 = vdwg.mxu0
    %979 = vmatprep.subr.mxu0 %v744
    %980 = vmatpush1.xpose.msra.mxu0 %v743
    %981 = vmatprep.subr.mxu0 0.0
    %982 = vmatpush1.xpose.msra.mxu0 0.0
    %983 = vmatprep.subr.mxu0 0.0
    %984 = vmatpush1.xpose.msra.mxu0 0.0
    %985 = vmatprep.subr.mxu0 0.0
    %986 = vmatpush1.xpose.msra.mxu0 0.0
    %987 = vmatprep.subr.mxu0 0.0
    %988 = vmatpush1.xpose.msra.mxu0 0.0
    %989 = vmatprep.subr.mxu0 0.0
    %990 = vmatpush1.xpose.msra.mxu0 0.0
    %991 = vmatprep.subr.mxu0 0.0
    %992 = vmatpush1.xpose.msra.mxu0 0.0
    %993 = vmatprep.subr.mxu0 0.0
    %994 = vmatpush1.xpose.msra.mxu0 0.0
    %995 = vmatprep.subr.mxu0 0.0
    %996 = vmatpush1.xpose.msra.mxu0 0.0
    %997 = vmatprep.subr.mxu0 0.0
    %998 = vmatpush1.xpose.msra.mxu0 0.0
    %999 = vmatprep.subr.mxu0 0.0
    %1000 = vmatpush1.xpose.msra.mxu0 0.0
    %1001 = vmatprep.subr.mxu0 0.0
    %1002 = vmatpush1.xpose.msra.mxu0 0.0
    %1003 = vmatprep.subr.mxu0 0.0
    %1004 = vmatpush1.xpose.msra.mxu0 0.0
    %1005 = vmatprep.subr.mxu0 0.0
    %1006 = vmatpush1.xpose.msra.mxu0 0.0
    %1007 = vmatprep.subr.mxu0 0.0
    %1008 = vmatpush1.xpose.msra.mxu0 0.0
    %1009 = vmatprep.subr.mxu0 0.0
    %1010 = vmatpush1.xpose.msra.mxu0 0.0
    %1011 = vmatprep.subr.mxu0 0.0
    %1012 = vmatpush1.xpose.msra.mxu0 0.0
    %1013 = vmatprep.subr.mxu0 0.0
    %1014 = vmatpush1.xpose.msra.mxu0 0.0
    %1015 = vmatprep.subr.mxu0 0.0
    %1016 = vmatpush1.xpose.msra.mxu0 0.0
    %1017 = vmatprep.subr.mxu0 0.0
    %1018 = vmatpush1.xpose.msra.mxu0 0.0
    %1019 = vmatprep.subr.mxu0 0.0
    %1020 = vmatpush1.xpose.msra.mxu0 0.0
    %1021 = vmatprep.subr.mxu0 0.0
    %1022 = vmatpush1.xpose.msra.mxu0 0.0
    %1023 = vmatprep.subr.mxu0 0.0
    %1024 = vmatpush1.xpose.msra.mxu0 0.0
    %1025 = vmatprep.subr.mxu0 0.0
    %1026 = vmatpush1.xpose.msra.mxu0 0.0
    %1027 = vmatprep.subr.mxu0 0.0
    %1028 = vmatpush1.xpose.msra.mxu0 0.0
    %1029 = vmatprep.subr.mxu0 0.0
    %1030 = vmatpush1.xpose.msra.mxu0 0.0
    %1031 = vmatprep.subr.mxu0 0.0
    %1032 = vmatpush1.xpose.msra.mxu0 0.0
    %1033 = vmatprep.subr.mxu0 0.0
    %1034 = vmatpush1.xpose.msra.mxu0 0.0
    %1035 = vmatprep.subr.mxu0 0.0
    %1036 = vmatpush1.xpose.msra.mxu0 0.0
    %1037 = vmatprep.subr.mxu0 0.0
    %1038 = vmatpush1.xpose.msra.mxu0 0.0
    %1039 = vmatprep.subr.mxu0 0.0
    %1040 = vmatpush1.xpose.msra.mxu0 0.0
    %1041 = vmatprep.subr.mxu0 0.0
    %1042 = vmatpush1.xpose.msra.mxu0 0.0
    %1043 = vmatprep.mubr.f32.mxu0 %v760
    %1044 = vmatmul.mubr.f32.gmra.mrb[0].mxu0 %v759
    %v1045 = vpop.f32.mrb[0].mxu0
    %v1046 = vadd.f32 %v976, %v1045
    %v1047 = vpop.f32.mrb[0].mxu0
    %1048 = vdwg.mxu0
    %1049 = vmatprep.subr.mxu0 %v746
    %1050 = vmatpush1.xpose.msra.mxu0 %v745
    %1051 = vmatprep.subr.mxu0 0.0
    %1052 = vmatpush1.xpose.msra.mxu0 0.0
    %1053 = vmatprep.subr.mxu0 0.0
    %1054 = vmatpush1.xpose.msra.mxu0 0.0
    %1055 = vmatprep.subr.mxu0 0.0
    %1056 = vmatpush1.xpose.msra.mxu0 0.0
    %1057 = vmatprep.subr.mxu0 0.0
    %1058 = vmatpush1.xpose.msra.mxu0 0.0
    %1059 = vmatprep.subr.mxu0 0.0
    %1060 = vmatpush1.xpose.msra.mxu0 0.0
    %1061 = vmatprep.subr.mxu0 0.0
    %1062 = vmatpush1.xpose.msra.mxu0 0.0
    %1063 = vmatprep.subr.mxu0 0.0
    %1064 = vmatpush1.xpose.msra.mxu0 0.0
    %1065 = vmatprep.subr.mxu0 0.0
    %1066 = vmatpush1.xpose.msra.mxu0 0.0
    %1067 = vmatprep.subr.mxu0 0.0
    %1068 = vmatpush1.xpose.msra.mxu0 0.0
    %1069 = vmatprep.subr.mxu0 0.0
    %1070 = vmatpush1.xpose.msra.mxu0 0.0
    %1071 = vmatprep.subr.mxu0 0.0
    %1072 = vmatpush1.xpose.msra.mxu0 0.0
    %1073 = vmatprep.subr.mxu0 0.0
    %1074 = vmatpush1.xpose.msra.mxu0 0.0
    %1075 = vmatprep.subr.mxu0 0.0
    %1076 = vmatpush1.xpose.msra.mxu0 0.0
    %1077 = vmatprep.subr.mxu0 0.0
    %1078 = vmatpush1.xpose.msra.mxu0 0.0
    %1079 = vmatprep.subr.mxu0 0.0
    %1080 = vmatpush1.xpose.msra.mxu0 0.0
    %1081 = vmatprep.subr.mxu0 0.0
    %1082 = vmatpush1.xpose.msra.mxu0 0.0
    %1083 = vmatprep.subr.mxu0 0.0
    %1084 = vmatpush1.xpose.msra.mxu0 0.0
    %1085 = vmatprep.subr.mxu0 0.0
    %1086 = vmatpush1.xpose.msra.mxu0 0.0
    %1087 = vmatprep.subr.mxu0 0.0
    %1088 = vmatpush1.xpose.msra.mxu0 0.0
    %1089 = vmatprep.subr.mxu0 0.0
    %1090 = vmatpush1.xpose.msra.mxu0 0.0
    %1091 = vmatprep.subr.mxu0 0.0
    %1092 = vmatpush1.xpose.msra.mxu0 0.0
    %1093 = vmatprep.subr.mxu0 0.0
    %1094 = vmatpush1.xpose.msra.mxu0 0.0
    %1095 = vmatprep.subr.mxu0 0.0
    %1096 = vmatpush1.xpose.msra.mxu0 0.0
    %1097 = vmatprep.subr.mxu0 0.0
    %1098 = vmatpush1.xpose.msra.mxu0 0.0
    %1099 = vmatprep.subr.mxu0 0.0
    %1100 = vmatpush1.xpose.msra.mxu0 0.0
    %1101 = vmatprep.subr.mxu0 0.0
    %1102 = vmatpush1.xpose.msra.mxu0 0.0
    %1103 = vmatprep.subr.mxu0 0.0
    %1104 = vmatpush1.xpose.msra.mxu0 0.0
    %1105 = vmatprep.subr.mxu0 0.0
    %1106 = vmatpush1.xpose.msra.mxu0 0.0
    %1107 = vmatprep.subr.mxu0 0.0
    %1108 = vmatpush1.xpose.msra.mxu0 0.0
    %1109 = vmatprep.subr.mxu0 0.0
    %1110 = vmatpush1.xpose.msra.mxu0 0.0
    %1111 = vmatprep.subr.mxu0 0.0
    %1112 = vmatpush1.xpose.msra.mxu0 0.0
    %1113 = vmatprep.mubr.f32.mxu0 %v762
    %1114 = vmatmul.mubr.f32.gmra.mrb[0].mxu0 %v761
    %v1115 = vpop.f32.mrb[0].mxu0
    %v1116 = vadd.f32 %v1046, %v1115
    %v1117 = vpop.f32.mrb[0].mxu0
    %1118 = vdwg.mxu0
    %1119 = vmatprep.subr.mxu0 %v748
    %1120 = vmatpush1.xpose.msra.mxu0 %v747
    %1121 = vmatprep.subr.mxu0 0.0
    %1122 = vmatpush1.xpose.msra.mxu0 0.0
    %1123 = vmatprep.subr.mxu0 0.0
    %1124 = vmatpush1.xpose.msra.mxu0 0.0
    %1125 = vmatprep.subr.mxu0 0.0
    %1126 = vmatpush1.xpose.msra.mxu0 0.0
    %1127 = vmatprep.subr.mxu0 0.0
    %1128 = vmatpush1.xpose.msra.mxu0 0.0
    %1129 = vmatprep.subr.mxu0 0.0
    %1130 = vmatpush1.xpose.msra.mxu0 0.0
    %1131 = vmatprep.subr.mxu0 0.0
    %1132 = vmatpush1.xpose.msra.mxu0 0.0
    %1133 = vmatprep.subr.mxu0 0.0
    %1134 = vmatpush1.xpose.msra.mxu0 0.0
    %1135 = vmatprep.subr.mxu0 0.0
    %1136 = vmatpush1.xpose.msra.mxu0 0.0
    %1137 = vmatprep.subr.mxu0 0.0
    %1138 = vmatpush1.xpose.msra.mxu0 0.0
    %1139 = vmatprep.subr.mxu0 0.0
    %1140 = vmatpush1.xpose.msra.mxu0 0.0
    %1141 = vmatprep.subr.mxu0 0.0
    %1142 = vmatpush1.xpose.msra.mxu0 0.0
    %1143 = vmatprep.subr.mxu0 0.0
    %1144 = vmatpush1.xpose.msra.mxu0 0.0
    %1145 = vmatprep.subr.mxu0 0.0
    %1146 = vmatpush1.xpose.msra.mxu0 0.0
    %1147 = vmatprep.subr.mxu0 0.0
    %1148 = vmatpush1.xpose.msra.mxu0 0.0
    %1149 = vmatprep.subr.mxu0 0.0
    %1150 = vmatpush1.xpose.msra.mxu0 0.0
    %1151 = vmatprep.subr.mxu0 0.0
    %1152 = vmatpush1.xpose.msra.mxu0 0.0
    %1153 = vmatprep.subr.mxu0 0.0
    %1154 = vmatpush1.xpose.msra.mxu0 0.0
    %1155 = vmatprep.subr.mxu0 0.0
    %1156 = vmatpush1.xpose.msra.mxu0 0.0
    %1157 = vmatprep.subr.mxu0 0.0
    %1158 = vmatpush1.xpose.msra.mxu0 0.0
    %1159 = vmatprep.subr.mxu0 0.0
    %1160 = vmatpush1.xpose.msra.mxu0 0.0
    %1161 = vmatprep.subr.mxu0 0.0
    %1162 = vmatpush1.xpose.msra.mxu0 0.0
    %1163 = vmatprep.subr.mxu0 0.0
    %1164 = vmatpush1.xpose.msra.mxu0 0.0
    %1165 = vmatprep.subr.mxu0 0.0
    %1166 = vmatpush1.xpose.msra.mxu0 0.0
    %1167 = vmatprep.subr.mxu0 0.0
    %1168 = vmatpush1.xpose.msra.mxu0 0.0
    %1169 = vmatprep.subr.mxu0 0.0
    %1170 = vmatpush1.xpose.msra.mxu0 0.0
    %1171 = vmatprep.subr.mxu0 0.0
    %1172 = vmatpush1.xpose.msra.mxu0 0.0
    %1173 = vmatprep.subr.mxu0 0.0
    %1174 = vmatpush1.xpose.msra.mxu0 0.0
    %1175 = vmatprep.subr.mxu0 0.0
    %1176 = vmatpush1.xpose.msra.mxu0 0.0
    %1177 = vmatprep.subr.mxu0 0.0
    %1178 = vmatpush1.xpose.msra.mxu0 0.0
    %1179 = vmatprep.subr.mxu0 0.0
    %1180 = vmatpush1.xpose.msra.mxu0 0.0
    %1181 = vmatprep.subr.mxu0 0.0
    %1182 = vmatpush1.xpose.msra.mxu0 0.0
    %1183 = vmatprep.mubr.f32.mxu0 %v764
    %1184 = vmatmul.mubr.f32.gmra.mrb[0].mxu0 %v763
    %v1185 = vpop.f32.mrb[0].mxu0
    %v1186 = vadd.f32 %v1116, %v1185
    %v1187 = vpop.f32.mrb[0].mxu0
    %1188 = vdwg.mxu0
    %1189 = vmatprep.subr.mxu0 %v750
    %1190 = vmatpush1.xpose.msra.mxu0 %v749
    %1191 = vmatprep.subr.mxu0 0.0
    %1192 = vmatpush1.xpose.msra.mxu0 0.0
    %1193 = vmatprep.subr.mxu0 0.0
    %1194 = vmatpush1.xpose.msra.mxu0 0.0
    %1195 = vmatprep.subr.mxu0 0.0
    %1196 = vmatpush1.xpose.msra.mxu0 0.0
    %1197 = vmatprep.subr.mxu0 0.0
    %1198 = vmatpush1.xpose.msra.mxu0 0.0
    %1199 = vmatprep.subr.mxu0 0.0
    %1200 = vmatpush1.xpose.msra.mxu0 0.0
    %1201 = vmatprep.subr.mxu0 0.0
    %1202 = vmatpush1.xpose.msra.mxu0 0.0
    %1203 = vmatprep.subr.mxu0 0.0
    %1204 = vmatpush1.xpose.msra.mxu0 0.0
    %1205 = vmatprep.subr.mxu0 0.0
    %1206 = vmatpush1.xpose.msra.mxu0 0.0
    %1207 = vmatprep.subr.mxu0 0.0
    %1208 = vmatpush1.xpose.msra.mxu0 0.0
    %1209 = vmatprep.subr.mxu0 0.0
    %1210 = vmatpush1.xpose.msra.mxu0 0.0
    %1211 = vmatprep.subr.mxu0 0.0
    %1212 = vmatpush1.xpose.msra.mxu0 0.0
    %1213 = vmatprep.subr.mxu0 0.0
    %1214 = vmatpush1.xpose.msra.mxu0 0.0
    %1215 = vmatprep.subr.mxu0 0.0
    %1216 = vmatpush1.xpose.msra.mxu0 0.0
    %1217 = vmatprep.subr.mxu0 0.0
    %1218 = vmatpush1.xpose.msra.mxu0 0.0
    %1219 = vmatprep.subr.mxu0 0.0
    %1220 = vmatpush1.xpose.msra.mxu0 0.0
    %1221 = vmatprep.subr.mxu0 0.0
    %1222 = vmatpush1.xpose.msra.mxu0 0.0
    %1223 = vmatprep.subr.mxu0 0.0
    %1224 = vmatpush1.xpose.msra.mxu0 0.0
    %1225 = vmatprep.subr.mxu0 0.0
    %1226 = vmatpush1.xpose.msra.mxu0 0.0
    %1227 = vmatprep.subr.mxu0 0.0
    %1228 = vmatpush1.xpose.msra.mxu0 0.0
    %1229 = vmatprep.subr.mxu0 0.0
    %1230 = vmatpush1.xpose.msra.mxu0 0.0
    %1231 = vmatprep.subr.mxu0 0.0
    %1232 = vmatpush1.xpose.msra.mxu0 0.0
    %1233 = vmatprep.subr.mxu0 0.0
    %1234 = vmatpush1.xpose.msra.mxu0 0.0
    %1235 = vmatprep.subr.mxu0 0.0
    %1236 = vmatpush1.xpose.msra.mxu0 0.0
    %1237 = vmatprep.subr.mxu0 0.0
    %1238 = vmatpush1.xpose.msra.mxu0 0.0
    %1239 = vmatprep.subr.mxu0 0.0
    %1240 = vmatpush1.xpose.msra.mxu0 0.0
    %1241 = vmatprep.subr.mxu0 0.0
    %1242 = vmatpush1.xpose.msra.mxu0 0.0
    %1243 = vmatprep.subr.mxu0 0.0
    %1244 = vmatpush1.xpose.msra.mxu0 0.0
    %1245 = vmatprep.subr.mxu0 0.0
    %1246 = vmatpush1.xpose.msra.mxu0 0.0
    %1247 = vmatprep.subr.mxu0 0.0
    %1248 = vmatpush1.xpose.msra.mxu0 0.0
    %1249 = vmatprep.subr.mxu0 0.0
    %1250 = vmatpush1.xpose.msra.mxu0 0.0
    %1251 = vmatprep.subr.mxu0 0.0
    %1252 = vmatpush1.xpose.msra.mxu0 0.0
    %1253 = vmatprep.mubr.f32.mxu0 %v766
    %1254 = vmatmul.mubr.f32.gmra.mrb[0].mxu0 %v765
    %v1255 = vpop.f32.mrb[0].mxu0
    %v1256 = vadd.f32 %v1186, %v1255
    %v1257 = vpop.f32.mrb[0].mxu0
    %1258 = vdwg.mxu0
    %1259 = vmatprep.subr.mxu0 %v752
    %1260 = vmatpush1.xpose.msra.mxu0 %v751
    %1261 = vmatprep.subr.mxu0 0.0
    %1262 = vmatpush1.xpose.msra.mxu0 0.0
    %1263 = vmatprep.subr.mxu0 0.0
    %1264 = vmatpush1.xpose.msra.mxu0 0.0
    %1265 = vmatprep.subr.mxu0 0.0
    %1266 = vmatpush1.xpose.msra.mxu0 0.0
    %1267 = vmatprep.subr.mxu0 0.0
    %1268 = vmatpush1.xpose.msra.mxu0 0.0
    %1269 = vmatprep.subr.mxu0 0.0
    %1270 = vmatpush1.xpose.msra.mxu0 0.0
    %1271 = vmatprep.subr.mxu0 0.0
    %1272 = vmatpush1.xpose.msra.mxu0 0.0
    %1273 = vmatprep.subr.mxu0 0.0
    %1274 = vmatpush1.xpose.msra.mxu0 0.0
    %1275 = vmatprep.subr.mxu0 0.0
    %1276 = vmatpush1.xpose.msra.mxu0 0.0
    %1277 = vmatprep.subr.mxu0 0.0
    %1278 = vmatpush1.xpose.msra.mxu0 0.0
    %1279 = vmatprep.subr.mxu0 0.0
    %1280 = vmatpush1.xpose.msra.mxu0 0.0
    %1281 = vmatprep.subr.mxu0 0.0
    %1282 = vmatpush1.xpose.msra.mxu0 0.0
    %1283 = vmatprep.subr.mxu0 0.0
    %1284 = vmatpush1.xpose.msra.mxu0 0.0
    %1285 = vmatprep.subr.mxu0 0.0
    %1286 = vmatpush1.xpose.msra.mxu0 0.0
    %1287 = vmatprep.subr.mxu0 0.0
    %1288 = vmatpush1.xpose.msra.mxu0 0.0
    %1289 = vmatprep.subr.mxu0 0.0
    %1290 = vmatpush1.xpose.msra.mxu0 0.0
    %1291 = vmatprep.subr.mxu0 0.0
    %1292 = vmatpush1.xpose.msra.mxu0 0.0
    %1293 = vmatprep.subr.mxu0 0.0
    %1294 = vmatpush1.xpose.msra.mxu0 0.0
    %1295 = vmatprep.subr.mxu0 0.0
    %1296 = vmatpush1.xpose.msra.mxu0 0.0
    %1297 = vmatprep.subr.mxu0 0.0
    %1298 = vmatpush1.xpose.msra.mxu0 0.0
    %1299 = vmatprep.subr.mxu0 0.0
    %1300 = vmatpush1.xpose.msra.mxu0 0.0
    %1301 = vmatprep.subr.mxu0 0.0
    %1302 = vmatpush1.xpose.msra.mxu0 0.0
    %1303 = vmatprep.subr.mxu0 0.0
    %1304 = vmatpush1.xpose.msra.mxu0 0.0
    %1305 = vmatprep.subr.mxu0 0.0
    %1306 = vmatpush1.xpose.msra.mxu0 0.0
    %1307 = vmatprep.subr.mxu0 0.0
    %1308 = vmatpush1.xpose.msra.mxu0 0.0
    %1309 = vmatprep.subr.mxu0 0.0
    %1310 = vmatpush1.xpose.msra.mxu0 0.0
    %1311 = vmatprep.subr.mxu0 0.0
    %1312 = vmatpush1.xpose.msra.mxu0 0.0
    %1313 = vmatprep.subr.mxu0 0.0
    %1314 = vmatpush1.xpose.msra.mxu0 0.0
    %1315 = vmatprep.subr.mxu0 0.0
    %1316 = vmatpush1.xpose.msra.mxu0 0.0
    %1317 = vmatprep.subr.mxu0 0.0
    %1318 = vmatpush1.xpose.msra.mxu0 0.0
    %1319 = vmatprep.subr.mxu0 0.0
    %1320 = vmatpush1.xpose.msra.mxu0 0.0
    %1321 = vmatprep.subr.mxu0 0.0
    %1322 = vmatpush1.xpose.msra.mxu0 0.0
    %1323 = vmatprep.mubr.f32.mxu0 %v768
    %1324 = vmatmul.mubr.f32.gmra.mrb[0].mxu0 %v767
    %v1325 = vpop.f32.mrb[0].mxu0
    %v1326 = vadd.f32 %v1256, %v1325
    %v1327 = vpop.f32.mrb[0].mxu0
    %1328 = vdwg.mxu0
    %v1329 = vlaneseq
    %v1330 = vshrl.u32 %v1329, 7
    %v1331 = vsub.s32 0, %v1330
    %v1332 = vrot.slane %v26, %v1331
    %vm1333 = vcmask 64512
    %v1335 = vsel %vm1333, %v1326, 0
    %1337 = vmatprep.subr.mxu0 0.0
    %1338 = vmatpush1.msra.mxu0 %v17
    %1339 = vmatprep.subr.mxu0 0.0
    %1340 = vmatpush1.msra.mxu0 0.0
    %1341 = vmatprep.subr.mxu0 0.0
    %1342 = vmatpush1.msra.mxu0 0.0
    %1343 = vmatprep.subr.mxu0 0.0
    %1344 = vmatpush1.msra.mxu0 0.0
    %1345 = vmatprep.subr.mxu0 0.0
    %1346 = vmatpush1.msra.mxu0 0.0
    %1347 = vmatprep.subr.mxu0 0.0
    %1348 = vmatpush1.msra.mxu0 0.0
    %1349 = vmatprep.subr.mxu0 0.0
    %1350 = vmatpush1.msra.mxu0 0.0
    %1351 = vmatprep.subr.mxu0 0.0
    %1352 = vmatpush1.msra.mxu0 0.0
    %1353 = vmatprep.subr.mxu0 0.0
    %1354 = vmatpush1.msra.mxu0 0.0
    %1355 = vmatprep.subr.mxu0 0.0
    %1356 = vmatpush1.msra.mxu0 0.0
    %1357 = vmatprep.subr.mxu0 0.0
    %1358 = vmatpush1.msra.mxu0 0.0
    %1359 = vmatprep.subr.mxu0 0.0
    %1360 = vmatpush1.msra.mxu0 0.0
    %1361 = vmatprep.subr.mxu0 0.0
    %1362 = vmatpush1.msra.mxu0 0.0
    %1363 = vmatprep.subr.mxu0 0.0
    %1364 = vmatpush1.msra.mxu0 0.0
    %1365 = vmatprep.subr.mxu0 0.0
    %1366 = vmatpush1.msra.mxu0 0.0
    %1367 = vmatprep.subr.mxu0 0.0
    %1368 = vmatpush1.msra.mxu0 0.0
    %1369 = vmatprep.subr.mxu0 0.0
    %1370 = vmatpush1.msra.mxu0 0.0
    %1371 = vmatprep.subr.mxu0 0.0
    %1372 = vmatpush1.msra.mxu0 0.0
    %1373 = vmatprep.subr.mxu0 0.0
    %1374 = vmatpush1.msra.mxu0 0.0
    %1375 = vmatprep.subr.mxu0 0.0
    %1376 = vmatpush1.msra.mxu0 0.0
    %1377 = vmatprep.subr.mxu0 0.0
    %1378 = vmatpush1.msra.mxu0 0.0
    %1379 = vmatprep.subr.mxu0 0.0
    %1380 = vmatpush1.msra.mxu0 0.0
    %1381 = vmatprep.subr.mxu0 0.0
    %1382 = vmatpush1.msra.mxu0 0.0
    %1383 = vmatprep.subr.mxu0 0.0
    %1384 = vmatpush1.msra.mxu0 0.0
    %1385 = vmatprep.subr.mxu0 0.0
    %1386 = vmatpush1.msra.mxu0 0.0
    %1387 = vmatprep.subr.mxu0 0.0
    %1388 = vmatpush1.msra.mxu0 0.0
    %1389 = vmatprep.subr.mxu0 0.0
    %1390 = vmatpush1.msra.mxu0 0.0
    %1391 = vmatprep.subr.mxu0 0.0
    %1392 = vmatpush1.msra.mxu0 0.0
    %1393 = vmatprep.subr.mxu0 0.0
    %1394 = vmatpush1.msra.mxu0 0.0
    %1395 = vmatprep.subr.mxu0 0.0
    %1396 = vmatpush1.msra.mxu0 0.0
    %1397 = vmatprep.subr.mxu0 0.0
    %1398 = vmatpush1.msra.mxu0 0.0
    %1399 = vmatprep.subr.mxu0 0.0
    %1400 = vmatpush1.msra.mxu0 0.0
    %1401 = vmatprep.mubr.f32.mxu0 0.0
    %1402 = vmatmul.mubr.f32.gmra.mrb[0].mxu0 %v1335
    %v1403 = vpop.f32.mrb[0].mxu0
    %v1404 = vadd.f32 %v1332, %v1403
    %v1405 = vpop.f32.mrb[0].mxu0
    %1406 = vdwg.mxu0
    %v1407 = vlaneseq
    %v1408 = vshrl.u32 %v1407, 7
    %v1409 = vsub.s32 0, %v1408
    %v1410 = vrot.slane %v27, %v1409
    %vm1411 = vcmask 261120
    %v1413 = vsel %vm1411, %v1404, 0
    %1415 = vmatprep.subr.mxu0 0.0
    %1416 = vmatpush1.msra.mxu0 %v18
    %1417 = vmatprep.subr.mxu0 0.0
    %1418 = vmatpush1.msra.mxu0 %v19
    %1419 = vmatprep.subr.mxu0 0.0
    %1420 = vmatpush1.msra.mxu0 %v20
    %1421 = vmatprep.subr.mxu0 0.0
    %1422 = vmatpush1.msra.mxu0 %v21
    %1423 = vmatprep.subr.mxu0 0.0
    %1424 = vmatpush1.msra.mxu0 0.0
    %1425 = vmatprep.subr.mxu0 0.0
    %1426 = vmatpush1.msra.mxu0 0.0
    %1427 = vmatprep.subr.mxu0 0.0
    %1428 = vmatpush1.msra.mxu0 0.0
    %1429 = vmatprep.subr.mxu0 0.0
    %1430 = vmatpush1.msra.mxu0 0.0
    %1431 = vmatprep.subr.mxu0 0.0
    %1432 = vmatpush1.msra.mxu0 0.0
    %1433 = vmatprep.subr.mxu0 0.0
    %1434 = vmatpush1.msra.mxu0 0.0
    %1435 = vmatprep.subr.mxu0 0.0
    %1436 = vmatpush1.msra.mxu0 0.0
    %1437 = vmatprep.subr.mxu0 0.0
    %1438 = vmatpush1.msra.mxu0 0.0
    %1439 = vmatprep.subr.mxu0 0.0
    %1440 = vmatpush1.msra.mxu0 0.0
    %1441 = vmatprep.subr.mxu0 0.0
    %1442 = vmatpush1.msra.mxu0 0.0
    %1443 = vmatprep.subr.mxu0 0.0
    %1444 = vmatpush1.msra.mxu0 0.0
    %1445 = vmatprep.subr.mxu0 0.0
    %1446 = vmatpush1.msra.mxu0 0.0
    %1447 = vmatprep.subr.mxu0 0.0
    %1448 = vmatpush1.msra.mxu0 0.0
    %1449 = vmatprep.subr.mxu0 0.0
    %1450 = vmatpush1.msra.mxu0 0.0
    %1451 = vmatprep.subr.mxu0 0.0
    %1452 = vmatpush1.msra.mxu0 0.0
    %1453 = vmatprep.subr.mxu0 0.0
    %1454 = vmatpush1.msra.mxu0 0.0
    %1455 = vmatprep.subr.mxu0 0.0
    %1456 = vmatpush1.msra.mxu0 0.0
    %1457 = vmatprep.subr.mxu0 0.0
    %1458 = vmatpush1.msra.mxu0 0.0
    %1459 = vmatprep.subr.mxu0 0.0
    %1460 = vmatpush1.msra.mxu0 0.0
    %1461 = vmatprep.subr.mxu0 0.0
    %1462 = vmatpush1.msra.mxu0 0.0
    %1463 = vmatprep.subr.mxu0 0.0
    %1464 = vmatpush1.msra.mxu0 0.0
    %1465 = vmatprep.subr.mxu0 0.0
    %1466 = vmatpush1.msra.mxu0 0.0
    %1467 = vmatprep.subr.mxu0 0.0
    %1468 = vmatpush1.msra.mxu0 0.0
    %1469 = vmatprep.subr.mxu0 0.0
    %1470 = vmatpush1.msra.mxu0 0.0
    %1471 = vmatprep.subr.mxu0 0.0
    %1472 = vmatpush1.msra.mxu0 0.0
    %1473 = vmatprep.subr.mxu0 0.0
    %1474 = vmatpush1.msra.mxu0 0.0
    %1475 = vmatprep.subr.mxu0 0.0
    %1476 = vmatpush1.msra.mxu0 0.0
    %1477 = vmatprep.subr.mxu0 0.0
    %1478 = vmatpush1.msra.mxu0 0.0
    %1479 = vmatprep.mubr.f32.mxu0 0.0
    %1480 = vmatmul.mubr.f32.gmra.mrb[0].mxu0 %v1413
    %v1481 = vpop.f32.mrb[0].mxu0
    %v1482 = vadd.f32 %v1410, %v1481
    %v1483 = vpop.f32.mrb[0].mxu0
    %1484 = vdwg.mxu0
    %v1485 = vtanh.pop %v1482
    %v1486 = vlaneseq
    %v1487 = vshrl.u32 %v1486, 7
    %v1488 = vsub.s32 0, %v1487
    %v1489 = vrot.slane %v28, %v1488
    %v1490 = vmul.f32 %v1485, %v1489
    %vm1491 = vcmask 130048
    %v1492 = vsel %vm1491, %v1490, 0.0
    %1493 = vadd.xlane.f32.xlu0 %v1492
    %v1494 = vpop.xlane.xlu0 %1493
    %v1495 = vlaneseq
    %v1496 = vshrl.u32 %v1495, 7
    %v1497 = vsub.s32 0, %v1496
    %v1498 = vrot.slane %v29, %v1497
    %v1499 = vadd.f32 %v1494, %v1498
    %vm1500 = vcmask 7168
    %v1501 = vsel %vm1500, %v1499, -inf
    %v1502 = vrot.slane %v1501, 4
    %v1503 = vmax.f32 %v1501, %v1502
    %v1504 = vrot.slane %v1503, 2
    %v1505 = vmax.f32 %v1503, %v1504
    %v1506 = vrot.slane %v1505, 1
    %v1507 = vmax.f32 %v1505, %v1506
    %v1508 = vsub.f32 %v1499, %v1507
    %v1509 = vmul.f32 %v1508, 1.442695
    %v1510 = vpow.pop %v1509
    %v1511 = vsel %vm1500, %v1510, 0.0
    %v1512 = vrot.slane %v1511, 4
    %v1513 = vadd.f32 %v1511, %v1512
    %v1514 = vrot.slane %v1513, 2
    %v1515 = vadd.f32 %v1513, %v1514
    %v1516 = vrot.slane %v1515, 1
    %v1517 = vadd.f32 %v1515, %v1516
    %v1518 = vrcp.pop %v1517
    %v1519 = vmul.f32 %v1510, %v1518
    %1521 = vset.pattern.permute.xlu0 0
    %1522 = vperm.xlu0 %1521, %v1519
    %v1523 = vpop.permute.xlu0 %1522
    %v1525 = vmul.f32 %v1523, %v1404
    %v1526 = vsel %vm1411, %v1525, 0.0
    %v1527 = vrot.slane %v1526, 4
    %v1528 = vadd.f32 %v1526, %v1527
    %v1529 = vrot.slane %v1528, 2
    %v1530 = vadd.f32 %v1528, %v1529
    %v1531 = vrot.slane %v1530, 1
    %v1532 = vadd.f32 %v1530, %v1531
    %v1534 = vsel %vm1411, %v1532, 0
    %1536 = vmatprep.subr.mxu0 0.0
    %1537 = vmatpush1.msra.mxu0 %v22
    %1538 = vmatprep.subr.mxu0 0.0
    %1539 = vmatpush1.msra.mxu0 %v23
    %1540 = vmatprep.subr.mxu0 0.0
    %1541 = vmatpush1.msra.mxu0 %v24
    %1542 = vmatprep.subr.mxu0 0.0
    %1543 = vmatpush1.msra.mxu0 %v25
    %1544 = vmatprep.subr.mxu0 0.0
    %1545 = vmatpush1.msra.mxu0 0.0
    %1546 = vmatprep.subr.mxu0 0.0
    %1547 = vmatpush1.msra.mxu0 0.0
    %1548 = vmatprep.subr.mxu0 0.0
    %1549 = vmatpush1.msra.mxu0 0.0
    %1550 = vmatprep.subr.mxu0 0.0
    %1551 = vmatpush1.msra.mxu0 0.0
    %1552 = vmatprep.subr.mxu0 0.0
    %1553 = vmatpush1.msra.mxu0 0.0
    %1554 = vmatprep.subr.mxu0 0.0
    %1555 = vmatpush1.msra.mxu0 0.0
    %1556 = vmatprep.subr.mxu0 0.0
    %1557 = vmatpush1.msra.mxu0 0.0
    %1558 = vmatprep.subr.mxu0 0.0
    %1559 = vmatpush1.msra.mxu0 0.0
    %1560 = vmatprep.subr.mxu0 0.0
    %1561 = vmatpush1.msra.mxu0 0.0
    %1562 = vmatprep.subr.mxu0 0.0
    %1563 = vmatpush1.msra.mxu0 0.0
    %1564 = vmatprep.subr.mxu0 0.0
    %1565 = vmatpush1.msra.mxu0 0.0
    %1566 = vmatprep.subr.mxu0 0.0
    %1567 = vmatpush1.msra.mxu0 0.0
    %1568 = vmatprep.subr.mxu0 0.0
    %1569 = vmatpush1.msra.mxu0 0.0
    %1570 = vmatprep.subr.mxu0 0.0
    %1571 = vmatpush1.msra.mxu0 0.0
    %1572 = vmatprep.subr.mxu0 0.0
    %1573 = vmatpush1.msra.mxu0 0.0
    %1574 = vmatprep.subr.mxu0 0.0
    %1575 = vmatpush1.msra.mxu0 0.0
    %1576 = vmatprep.subr.mxu0 0.0
    %1577 = vmatpush1.msra.mxu0 0.0
    %1578 = vmatprep.subr.mxu0 0.0
    %1579 = vmatpush1.msra.mxu0 0.0
    %1580 = vmatprep.subr.mxu0 0.0
    %1581 = vmatpush1.msra.mxu0 0.0
    %1582 = vmatprep.subr.mxu0 0.0
    %1583 = vmatpush1.msra.mxu0 0.0
    %1584 = vmatprep.subr.mxu0 0.0
    %1585 = vmatpush1.msra.mxu0 0.0
    %1586 = vmatprep.subr.mxu0 0.0
    %1587 = vmatpush1.msra.mxu0 0.0
    %1588 = vmatprep.subr.mxu0 0.0
    %1589 = vmatpush1.msra.mxu0 0.0
    %1590 = vmatprep.subr.mxu0 0.0
    %1591 = vmatpush1.msra.mxu0 0.0
    %1592 = vmatprep.subr.mxu0 0.0
    %1593 = vmatpush1.msra.mxu0 0.0
    %1594 = vmatprep.subr.mxu0 0.0
    %1595 = vmatpush1.msra.mxu0 0.0
    %1596 = vmatprep.subr.mxu0 0.0
    %1597 = vmatpush1.msra.mxu0 0.0
    %1598 = vmatprep.subr.mxu0 0.0
    %1599 = vmatpush1.msra.mxu0 0.0
    %1600 = vmatprep.mubr.f32.mxu0 0.0
    %1601 = vmatmul.mubr.f32.gmra.mrb[0].mxu0 %v1534
    %v1602 = vpop.f32.mrb[0].mxu0
    %v1603 = vadd.f32 %v30, %v1602
    %v1604 = vpop.f32.mrb[0].mxu0
    %1605 = vdwg.mxu0
    %vm1606 = vcmask 8192
    %1607 = vst.msk [vmem:[#allocation2] sm:$0x1] %vm1606, %v1603
    // Predicated region
    $region14: #{inference_forward.1} parent=1 // pred_check
      _
    $region15: #{inference_forward.1} parent=1 // pred_check_branch
      %1609 = sbr.rel (0) target = $region17
    $region16: #{inference_forward.1} parent=1 // pred_region
      %s1611 = ssub.s32 16, 16
      %1612 = vsyncadd [#allocation3], %s1611
      %s1614 = sshll.u32 [#allocation2], 4
      %s1615 = int_to_ptr.vmem [resolvable:$true] %s1614
      %1617 = dma.vmem_to_hbm [thread:$0]  %s1615, 16, %s3, [#allocation3]
    $region17: #{inference_forward.1} parent=1 // pred_fallthru
      _
    // Predicated region
    $region18: #{inference_forward.1} parent=1 // pred_check
      _
    $region19: #{inference_forward.1} parent=1 // pred_check_branch
      %1619 = sbr.rel (0) target = $region21
    $region20: #{inference_forward.1} parent=1 // pred_region
      %1620 = dma.done [#allocation3], 16
    $region21: #{inference_forward.1} parent=1 // pred_fallthru
      _
    %1621 = vsyncpa [#allocation3], 1

</llo_original>
